<compile_context>
chip_gen: v7x
topology: tpu7x:2x2x1
jax: 0.10.0
libtpu: 0.0.40
codegen_flags: <defaults>
</compile_context>

<pallas_src>
import math

import jax
import jax.numpy as jnp
from jax.experimental import pallas as pl
from jax.experimental.pallas import tpu as pltpu

HIDDEN = 768            # fixed by nn.Linear(768, 768)
TN = 128                # output-hidden columns per head per grid step
NPAR = 2                # leading "parallel" axis (megacore split on v7x)
N_INNER = HIDDEN // (NPAR * TN)   # 3 inner (arbitrary) steps per core


def _gaussian_nll_kernel(img_ref, text_ref, w_ref, b_ref, part_ref, acc_ref):
    """One grid step: TN mean-columns + TN cov-columns -> partial quad+logdet."""
    j = pl.program_id(1)

    @pl.when(j == 0)
    def _init():
        acc_ref[...] = jnp.zeros_like(acc_ref)

    # Single MXU matmul over the interleaved [mean | cov] weight block (bf16 in,
    # f32 accumulate), bias added in f32.
    x = img_ref[...].astype(jnp.bfloat16)                       # (bs, 768)
    y = jnp.dot(x, w_ref[...], preferred_element_type=jnp.float32)
    y = y + b_ref[...]                                          # (bs, 2*TN) f32

    mean = y[:, :TN]
    z = y[:, TN:]
    # Softplus (beta=1, threshold=20), clamped so underflow can't give log(0)/div0.
    cov = jnp.where(z > 20.0, z, jnp.log1p(jnp.exp(jnp.minimum(z, 20.0))))
    cov = jnp.maximum(cov, 1e-30)

    diff = text_ref[...].astype(jnp.float32) - mean
    # diff^2 / cov via reciprocal (EUP) + log cov contribution.
    contrib = diff * diff * pl.reciprocal(cov, approx=False) + jnp.log(cov)

    # Reduce lanes then sublanes -> (1, 1) partial sum, accumulate in VMEM.
    s = jnp.sum(jnp.sum(contrib, axis=-1, keepdims=True), axis=0, keepdims=True)
    acc_ref[...] += s

    @pl.when(j == pl.num_programs(1) - 1)
    def _finalize():
        part_ref[...] = jnp.broadcast_to(acc_ref[...], part_ref.shape)


@jax.jit
def gaussian_approx_loss(img_pooled, text_feats, w_mean, b_mean, w_cov, b_cov):
    """Returns (-log_prob.mean(), None), mirroring the PyTorch forward.

    Weights are (in, out) = torch W.T; biases are (1, 768).
    """
    bs, d = img_pooled.shape
    assert d == HIDDEN and text_feats.shape == (bs, d)

    n_tiles = HIDDEN // TN                              # 6
    # Interleave the two heads per TN-tile so one weight block of width 2*TN
    # holds [mean cols t*TN:(t+1)*TN | cov cols t*TN:(t+1)*TN].
    wm = w_mean.astype(jnp.bfloat16).reshape(HIDDEN, n_tiles, 1, TN)
    wc = w_cov.astype(jnp.bfloat16).reshape(HIDDEN, n_tiles, 1, TN)
    w_cat = jnp.concatenate([wm, wc], axis=2).reshape(HIDDEN, 2 * HIDDEN)
    bm = b_mean.astype(jnp.float32).reshape(1, n_tiles, 1, TN)
    bc = b_cov.astype(jnp.float32).reshape(1, n_tiles, 1, TN)
    b_cat = jnp.concatenate([bm, bc], axis=2).reshape(1, 2 * HIDDEN)

    partials = pl.pallas_call(
        _gaussian_nll_kernel,
        out_shape=jax.ShapeDtypeStruct((NPAR * 8, 128), jnp.float32),
        grid_spec=pltpu.PrefetchScalarGridSpec(
            num_scalar_prefetch=0,
            grid=(NPAR, N_INNER),
            in_specs=[
                # image pooler output: same block every step
                pl.BlockSpec((bs, HIDDEN), lambda c, j: (0, 0)),
                # text features: column tile matching this step's mean columns
                pl.BlockSpec((bs, TN), lambda c, j: (0, c * N_INNER + j)),
                # interleaved [mean|cov] weight block (768, 2*TN) bf16
                pl.BlockSpec((HIDDEN, 2 * TN), lambda c, j: (0, c * N_INNER + j)),
                # interleaved bias block (1, 2*TN) f32
                pl.BlockSpec((1, 2 * TN), lambda c, j: (0, c * N_INNER + j)),
            ],
            # per-core partial sum, broadcast into its own (8,128) slab
            out_specs=pl.BlockSpec((8, 128), lambda c, j: (c, 0)),
            scratch_shapes=[pltpu.VMEM((1, 1), jnp.float32)],
        ),
        compiler_params=pltpu.CompilerParams(
            dimension_semantics=("parallel", "arbitrary")),
    )(img_pooled, text_feats, w_cat, b_cat)

    # Combine per-core partial sums of sum_b sum_d [diff^2/cov + log cov].
    total = partials[0, 0] + partials[8, 0]
    loss = 0.5 * (total / bs + HIDDEN * math.log(2.0 * math.pi))
    return loss, None


if __name__ == "__main__":
    bs = 8
    key = jax.random.PRNGKey(0)
    k_vllf, k_out, k_wm, k_bm, k_wc, k_bc = jax.random.split(key, 6)

    # Synthetic stand-ins for the frozen backbone pooler outputs.
    vllf = jax.random.normal(k_vllf, (bs, 2 * HIDDEN), dtype=jnp.float32)
    text_feats = vllf[:, :HIDDEN]                       # vllf[:, :768]
    img_pooled = jax.random.normal(k_out, (bs, HIDDEN), dtype=jnp.float32)

    # Deterministic head parameters (stored as (in, out), i.e. torch W.T).
    scale = 0.02
    w_mean = scale * jax.random.normal(k_wm, (HIDDEN, HIDDEN), jnp.float32)
    b_mean = scale * jax.random.normal(k_bm, (1, HIDDEN), jnp.float32)
    w_cov = scale * jax.random.normal(k_wc, (HIDDEN, HIDDEN), jnp.float32)
    b_cov = scale * jax.random.normal(k_bc, (1, HIDDEN), jnp.float32)

    loss, aux = gaussian_approx_loss(img_pooled, text_feats,
                                     w_mean, b_mean, w_cov, b_cov)
    loss = jax.block_until_ready(loss)

    # Pure-JAX f32 reference (diag-MVN NLL) for a sanity check.
    mean_r = img_pooled @ w_mean + b_mean
    z_r = img_pooled @ w_cov + b_cov
    cov_r = jnp.where(z_r > 20.0, z_r, jnp.log1p(jnp.exp(jnp.minimum(z_r, 20.0))))
    diff_r = text_feats - mean_r
    logp = -0.5 * (jnp.sum(diff_r * diff_r / cov_r, axis=-1)
                   + jnp.sum(jnp.log(cov_r), axis=-1)
                   + HIDDEN * math.log(2.0 * math.pi))
    ref_loss = -jnp.mean(logp)

    assert aux is None and bool(jnp.isfinite(loss))
    rel_err = abs(float(loss) - float(ref_loss)) / max(1.0, abs(float(ref_loss)))
    assert rel_err < 2e-2, (float(loss), float(ref_loss), rel_err)
    print("KERNEL_OK")
</pallas_src>

<mosaic_0001>
module attributes {stable_mosaic.version = 11 : i64} {
  func.func @_gaussian_nll_kernel(%arg0: i32, %arg1: i32, %arg2: memref<8x768xf32, #tpu.memory_space<vmem>>, %arg3: memref<8x128xf32, #tpu.memory_space<vmem>>, %arg4: memref<768x256xbf16, #tpu.memory_space<vmem>>, %arg5: memref<1x256xf32, #tpu.memory_space<vmem>>, %arg6: memref<8x128xf32, #tpu.memory_space<vmem>>, %arg7: memref<1x1xf32, #tpu.memory_space<vmem>>) attributes {dimension_semantics = [#tpu.dimension_semantics<parallel>, #tpu.dimension_semantics<arbitrary>], iteration_bounds = array<i64: 2, 3>, scalar_prefetch = 0 : i64, scratch_operands = 1 : i64, tpu.core_type = #tpu.core_type<tc>, window_params = [{pipeline_mode = #tpu.pipeline_mode<synchronous>, transform_indices = @transform_0, window_bounds = array<i64: 8, 768>}, {transform_indices = @transform_1, window_bounds = array<i64: 8, 128>}, {transform_indices = @transform_2, window_bounds = array<i64: 768, 256>}, {transform_indices = @transform_3, window_bounds = array<i64: 1, 256>}, {transform_indices = @transform_4, window_bounds = array<i64: 8, 128>}]} {
    %c0_i32 = arith.constant 0 : i32
    %0 = arith.cmpi eq, %arg1, %c0_i32 : i32
    %1 = arith.extui %0 : i1 to i32
    %c0_i32_0 = arith.constant 0 : i32
    %2 = arith.cmpi ne, %1, %c0_i32_0 : i32
    scf.if %2 {
      %cst_18 = arith.constant 0.000000e+00 : f32
      %38 = vector.broadcast %cst_18 : f32 to vector<1x1xf32>
      %c0_19 = arith.constant 0 : index
      %c0_20 = arith.constant 0 : index
      %39 = vector.load %arg7[%c0_19, %c0_20] : memref<1x1xf32, #tpu.memory_space<vmem>>, vector<1x1xf32>
      tpu.vector_store %arg7[%c0_19, %c0_20], %38 {strides = array<i32>} : memref<1x1xf32, #tpu.memory_space<vmem>>, vector<1x1xf32>,
    } else {
    }
    %c0 = arith.constant 0 : index
    %c0_1 = arith.constant 0 : index
    %3 = vector.load %arg2[%c0, %c0_1] : memref<8x768xf32, #tpu.memory_space<vmem>>, vector<8x768xf32>
    %4 = arith.truncf %3 : vector<8x768xf32> to vector<8x768xbf16>
    %c0_2 = arith.constant 0 : index
    %c0_3 = arith.constant 0 : index
    %5 = vector.load %arg4[%c0_2, %c0_3] : memref<768x256xbf16, #tpu.memory_space<vmem>>, vector<768x256xbf16>
    %cst = arith.constant dense<0.000000e+00> : vector<8x256xf32>
    %6 = tpu.matmul %4, %5, %cst {dimension_numbers = #tpu.dot_dimension_numbers<[1], [0], [0], [1], [0, 0, 1, 1], [], []>} : vector<8x768xbf16>, vector<768x256xbf16>, vector<8x256xf32> -> vector<8x256xf32>
    %c0_4 = arith.constant 0 : index
    %c0_5 = arith.constant 0 : index
    %7 = vector.load %arg5[%c0_4, %c0_5] : memref<1x256xf32, #tpu.memory_space<vmem>>, vector<1x256xf32>
    %8 = vector.broadcast %7 : vector<1x256xf32> to vector<8x256xf32>
    %9 = arith.addf %6, %8 : vector<8x256xf32>
    %10 = vector.extract_strided_slice %9 {offsets = [0, 0], sizes = [8, 128], strides = [1, 1]} : vector<8x256xf32> to vector<8x128xf32>
    %11 = vector.extract_strided_slice %9 {offsets = [0, 128], sizes = [8, 128], strides = [1, 1]} : vector<8x256xf32> to vector<8x128xf32>
    %cst_6 = arith.constant 2.000000e+01 : f32
    %12 = vector.broadcast %cst_6 : f32 to vector<8x128xf32>
    %13 = arith.cmpf ogt, %11, %12 : vector<8x128xf32>
    %cst_7 = arith.constant 2.000000e+01 : f32
    %14 = vector.broadcast %cst_7 : f32 to vector<8x128xf32>
    %15 = arith.minimumf %11, %14 : vector<8x128xf32>
    %16 = math.exp %15 : vector<8x128xf32>
    %17 = math.log1p %16 : vector<8x128xf32>
    %18 = arith.select %13, %11, %17 : vector<8x128xi1>, vector<8x128xf32>
    %cst_8 = arith.constant 1.000000e-30 : f32
    %19 = vector.broadcast %cst_8 : f32 to vector<8x128xf32>
    %20 = arith.maximumf %18, %19 : vector<8x128xf32>
    %c0_9 = arith.constant 0 : index
    %c0_10 = arith.constant 0 : index
    %21 = vector.load %arg3[%c0_9, %c0_10] : memref<8x128xf32, #tpu.memory_space<vmem>>, vector<8x128xf32>
    %22 = arith.subf %21, %10 : vector<8x128xf32>
    %23 = arith.mulf %22, %22 : vector<8x128xf32>
    %24 = tpu.reciprocal %20 : vector<8x128xf32> -> vector<8x128xf32>
    %25 = arith.mulf %23, %24 : vector<8x128xf32>
    %26 = math.log %20 : vector<8x128xf32>
    %27 = arith.addf %25, %26 : vector<8x128xf32>
    %cst_11 = arith.constant dense<0.000000e+00> : vector<8xf32>
    %28 = vector.multi_reduction <add>, %27, %cst_11 [1] : vector<8x128xf32> to vector<8xf32>
    %29 = vector.shape_cast %28 : vector<8xf32> to vector<8x1xf32>
    %cst_12 = arith.constant dense<0.000000e+00> : vector<1xf32>
    %30 = vector.multi_reduction <add>, %29, %cst_12 [0] : vector<8x1xf32> to vector<1xf32>
    %31 = vector.shape_cast %30 : vector<1xf32> to vector<1x1xf32>
    %c0_13 = arith.constant 0 : index
    %c0_14 = arith.constant 0 : index
    %32 = vector.load %arg7[%c0_13, %c0_14] : memref<1x1xf32, #tpu.memory_space<vmem>>, vector<1x1xf32>
    %33 = arith.addf %32, %31 : vector<1x1xf32>
    %c0_15 = arith.constant 0 : index
    %c0_16 = arith.constant 0 : index
    %34 = vector.load %arg7[%c0_15, %c0_16] : memref<1x1xf32, #tpu.memory_space<vmem>>, vector<1x1xf32>
    tpu.vector_store %arg7[%c0_15, %c0_16], %33 {strides = array<i32>} : memref<1x1xf32, #tpu.memory_space<vmem>>, vector<1x1xf32>,
    %c2_i32 = arith.constant 2 : i32
    %35 = arith.cmpi eq, %arg1, %c2_i32 : i32
    %36 = arith.extui %35 : i1 to i32
    %c0_i32_17 = arith.constant 0 : i32
    %37 = arith.cmpi ne, %36, %c0_i32_17 : i32
    scf.if %37 {
      %c0_18 = arith.constant 0 : index
      %c0_19 = arith.constant 0 : index
      %38 = vector.load %arg7[%c0_18, %c0_19] : memref<1x1xf32, #tpu.memory_space<vmem>>, vector<1x1xf32>
      %39 = vector.shape_cast %38 : vector<1x1xf32> to vector<1x1xf32>
      %40 = vector.broadcast %39 : vector<1x1xf32> to vector<8x128xf32>
      %c0_20 = arith.constant 0 : index
      %c0_21 = arith.constant 0 : index
      %41 = vector.load %arg6[%c0_20, %c0_21] : memref<8x128xf32, #tpu.memory_space<vmem>>, vector<8x128xf32>
      tpu.vector_store %arg6[%c0_20, %c0_21], %40 {strides = array<i32>} : memref<8x128xf32, #tpu.memory_space<vmem>>, vector<8x128xf32>,
    } else {
    }
    return
  }
  func.func @transform_0(%arg0: i32, %arg1: i32) -> (i32, i32) {
    %c0_i32 = arith.constant 0 : i32
    %c0_i32_0 = arith.constant 0 : i32
    %c0_i32_1 = arith.constant 0 : i32
    return %c0_i32, %c0_i32_0 : i32, i32
  }
  func.func @transform_1(%arg0: i32, %arg1: i32) -> (i32, i32) {
    %c3_i32 = arith.constant 3 : i32
    %0 = arith.muli %arg0, %c3_i32 : i32
    %1 = arith.addi %0, %arg1 : i32
    %c0_i32 = arith.constant 0 : i32
    %c0_i32_0 = arith.constant 0 : i32
    return %c0_i32, %1 : i32, i32
  }
  func.func @transform_2(%arg0: i32, %arg1: i32) -> (i32, i32) {
    %c3_i32 = arith.constant 3 : i32
    %0 = arith.muli %arg0, %c3_i32 : i32
    %1 = arith.addi %0, %arg1 : i32
    %c0_i32 = arith.constant 0 : i32
    %c0_i32_0 = arith.constant 0 : i32
    return %c0_i32, %1 : i32, i32
  }
  func.func @transform_3(%arg0: i32, %arg1: i32) -> (i32, i32) {
    %c3_i32 = arith.constant 3 : i32
    %0 = arith.muli %arg0, %c3_i32 : i32
    %1 = arith.addi %0, %arg1 : i32
    %c0_i32 = arith.constant 0 : i32
    %c0_i32_0 = arith.constant 0 : i32
    return %c0_i32, %1 : i32, i32
  }
  func.func @transform_4(%arg0: i32, %arg1: i32) -> (i32, i32) {
    %c0_i32 = arith.constant 0 : i32
    %c0_i32_0 = arith.constant 0 : i32
    return %arg0, %c0_i32 : i32, i32
  }
}

</mosaic_0001>

<llo_original>
// kernel: gaussian_approx_loss.1
$region0: #{gaussian_approx_loss.1}
  #allocation0 [shape = 'u32[]', space=smem, size = 0x4, offset = 0x4, fixed_abs, tag = 'smem constant byte address 0x4 - core index']
  #allocation1 [shape = 'u32[144,128]{1,0:T(1,128)}', space=vmem, size = 0x12000, scoped, tag = 'internal scratch']
  #allocation2 [shape = 'f32[1,1]{1,0:T(1,128)}', space=vmem, size = 0x200, scoped, tag = 'scratch operand']
  %s0 = inlined_call_operand.vmem [shape: f32[8,768], index: 0, kind: input, shape index: {}]
  %s1 = inlined_call_operand.vmem [shape: f32[8,768], index: 1, kind: input, shape index: {}]
  %s2 = inlined_call_operand.vmem [shape: bf16[768,1536], index: 2, kind: input, shape index: {}]
  %s3 = inlined_call_operand.vmem [shape: f32[1,1536], index: 3, kind: input, shape index: {}]
  %s4 = inlined_call_operand.vmem [shape: f32[16,128], index: 4, kind: output, shape index: {}]
  %s5 = sld [smem:[#allocation0]]
  $region95: #{gaussian_approx_loss.1} parent=0
    _
  %s7 = ssub.s32 1, %s5
  %s8 = scalar_select 0, %s7, %s5
  $region1: #{gaussian_approx_loss.1} parent=0
    #allocation3 [shape = 'u8[786432]{0}', space=vmem, size = 0xc0000, scoped, tag = 'input window, operand 2']
    loop: start=0, step=1, limit=8
    $region2: #{gaussian_approx_loss.1} parent=1 // loop_pre_header
      _
    $region3: #{gaussian_approx_loss.1} parent=1 // loop_header
      %s10 = sphi 0, %s14
      %p11 = scmp.ge.s32.totalorder %s10, 8
      %s17 = sphi 0, %s29
      %s18 = sphi 0, %s25
      %s19 = sphi 0, %s17
      %s20 = sphi 0, %s18
      %s21 = sphi 0, %s19
      %s22 = sphi 0, %s20
      %s30 = sphi 0, %s30
      %s32 = sphi 0, %s30
      %s33 = sphi 0, %s32
      %s47 = sphi 0, %s33
      %s57 = sphi 0, %s59
      %s60 = sphi 0, %s57
      %s61 = sphi 0, %s60
      %s77 = sphi 0, %s61
      %s87 = sphi 0, %s89
      %s90 = sphi 0, %s87
      %s91 = sphi 0, %s90
      %s107 = sphi 0, %s91
      %s117 = sphi 0, %s119
      %s120 = sphi 0, %s117
      %s121 = sphi 0, %s120
      %s137 = sphi 0, %s121
      %s143 = sphi 0, %s145
      %s146 = sphi 0, %s143
      %s147 = sphi 0, %s146
      %s163 = sphi 0, %s147
    $region4: #{gaussian_approx_loss.1} parent=1 // loop_header_branch
      %13 = sbr.rel (%p11) target = $region8
    $region5: #{gaussian_approx_loss.1} parent=1 // loop_body
      %s15 = ssub.s32 %s10, 1
      %s16 = ssub.s32 %s10, 2
      %s23 = sadd.s32 1, %s18
      %p24 = scmp.ge.s32.totalorder %s23, 3
      %s25 = scalar_select %p24, 0, %s23
      %s26 = sadd.s32 1, %s17
      %s27 = scalar_select %p24, %s26, %s17
      %p28 = scmp.ge.s32.totalorder %s27, 2
      %s29 = scalar_select %p28, 0, %s27
      %s31 = sadd.s32 %s30, 1
      %p34 = scmp.eq.s32.totalorder %s10, 5
      %p35 = scmp.ne.s32.totalorder %s30, %s32
      %p36 = scmp.eq.s32.totalorder %s10, 0
      %p37 = por %p35, %p36
      %p38 = scmp.ne.s32.totalorder %s30, %s32
      %p39 = scmp.eq.s32.totalorder %s15, 5
      %p40 = por %p38, %p39
      %p41 = scmp.ne.s32.totalorder %s32, %s33
      %p42 = scmp.eq.s32.totalorder %s15, 0
      %p43 = por %p41, %p42
      %p44 = scmp.ne.s32.totalorder %s32, %s33
      %p45 = scmp.eq.s32.totalorder %s16, 5
      %p46 = por %p44, %p45
      %p48 = scmp.ne.s32.totalorder %s33, %s47
      %p49 = scmp.eq.s32.totalorder %s16, 0
      %p50 = por %p48, %p49
      %s51 = smul.u32 %s17, 3
      %s52 = sadd.s32 %s51, %s18
      %s53 = smul.u32 %s29, 3
      %s54 = sadd.s32 %s53, %s25
      %s55 = ssub.s32 %s52, %s54
      %p56 = scmp.eq.s32.totalorder %s55, 0
      %s58 = sadd.s32 %s57, 1
      %s59 = scalar_select %p56, %s57, %s58
      %p62 = pneg %p56
      %p63 = scmp.eq.s32.totalorder %s10, 5
      %p64 = por %p62, %p63
      %p65 = scmp.ne.s32.totalorder %s57, %s60
      %p66 = scmp.eq.s32.totalorder %s10, 0
      %p67 = por %p65, %p66
      %p68 = scmp.ne.s32.totalorder %s57, %s60
      %p69 = scmp.eq.s32.totalorder %s15, 5
      %p70 = por %p68, %p69
      %p71 = scmp.ne.s32.totalorder %s60, %s61
      %p72 = scmp.eq.s32.totalorder %s15, 0
      %p73 = por %p71, %p72
      %p74 = scmp.ne.s32.totalorder %s60, %s61
      %p75 = scmp.eq.s32.totalorder %s16, 5
      %p76 = por %p74, %p75
      %p78 = scmp.ne.s32.totalorder %s61, %s77
      %p79 = scmp.eq.s32.totalorder %s16, 0
      %p80 = por %p78, %p79
      %s81 = smul.u32 %s17, 3
      %s82 = sadd.s32 %s81, %s18
      %s83 = smul.u32 %s29, 3
      %s84 = sadd.s32 %s83, %s25
      %s85 = ssub.s32 %s82, %s84
      %p86 = scmp.eq.s32.totalorder %s85, 0
      %s88 = sadd.s32 %s87, 1
      %s89 = scalar_select %p86, %s87, %s88
      %p92 = pneg %p86
      %p93 = scmp.eq.s32.totalorder %s10, 5
      %p94 = por %p92, %p93
      %p95 = scmp.ne.s32.totalorder %s87, %s90
      %p96 = scmp.eq.s32.totalorder %s10, 0
      %p97 = por %p95, %p96
      %p98 = scmp.ne.s32.totalorder %s87, %s90
      %p99 = scmp.eq.s32.totalorder %s15, 5
      %p100 = por %p98, %p99
      %p101 = scmp.ne.s32.totalorder %s90, %s91
      %p102 = scmp.eq.s32.totalorder %s15, 0
      %p103 = por %p101, %p102
      %p104 = scmp.ne.s32.totalorder %s90, %s91
      %p105 = scmp.eq.s32.totalorder %s16, 5
      %p106 = por %p104, %p105
      %p108 = scmp.ne.s32.totalorder %s91, %s107
      %p109 = scmp.eq.s32.totalorder %s16, 0
      %p110 = por %p108, %p109
      %s111 = smul.u32 %s17, 3
      %s112 = sadd.s32 %s111, %s18
      %s113 = smul.u32 %s29, 3
      %s114 = sadd.s32 %s113, %s25
      %s115 = ssub.s32 %s112, %s114
      %p116 = scmp.eq.s32.totalorder %s115, 0
      %s118 = sadd.s32 %s117, 1
      %s119 = scalar_select %p116, %s117, %s118
      %p122 = pneg %p116
      %p123 = scmp.eq.s32.totalorder %s10, 5
      %p124 = por %p122, %p123
      %p125 = scmp.ne.s32.totalorder %s117, %s120
      %p126 = scmp.eq.s32.totalorder %s10, 0
      %p127 = por %p125, %p126
      %p128 = scmp.ne.s32.totalorder %s117, %s120
      %p129 = scmp.eq.s32.totalorder %s15, 5
      %p130 = por %p128, %p129
      %p131 = scmp.ne.s32.totalorder %s120, %s121
      %p132 = scmp.eq.s32.totalorder %s15, 0
      %p133 = por %p131, %p132
      %p134 = scmp.ne.s32.totalorder %s120, %s121
      %p135 = scmp.eq.s32.totalorder %s16, 5
      %p136 = por %p134, %p135
      %p138 = scmp.ne.s32.totalorder %s121, %s137
      %p139 = scmp.eq.s32.totalorder %s16, 0
      %p140 = por %p138, %p139
      %s141 = ssub.s32 %s17, %s29
      %p142 = scmp.eq.s32.totalorder %s141, 0
      %s144 = sadd.s32 %s143, 1
      %s145 = scalar_select %p142, %s143, %s144
      %p148 = pneg %p142
      %p149 = scmp.eq.s32.totalorder %s10, 5
      %p150 = por %p148, %p149
      %p151 = scmp.ne.s32.totalorder %s143, %s146
      %p152 = scmp.eq.s32.totalorder %s10, 0
      %p153 = por %p151, %p152
      %p154 = scmp.ne.s32.totalorder %s143, %s146
      %p155 = scmp.eq.s32.totalorder %s15, 5
      %p156 = por %p154, %p155
      %p157 = scmp.ne.s32.totalorder %s146, %s147
      %p158 = scmp.eq.s32.totalorder %s15, 0
      %p159 = por %p157, %p158
      %p160 = scmp.ne.s32.totalorder %s146, %s147
      %p161 = scmp.eq.s32.totalorder %s16, 5
      %p162 = por %p160, %p161
      %p164 = scmp.ne.s32.totalorder %s147, %s163
      %p165 = scmp.eq.s32.totalorder %s16, 0
      %p166 = por %p164, %p165
      %p167 = scmp.le.s32.totalorder 1, %s10
      %p168 = scmp.lt.s32.totalorder %s10, 7
      %p169 = pnand %p167, %p168
      %p170 = pneg %p169
      // Predicated region
      $region9: #{gaussian_approx_loss.1} parent=5 // pred_check
        _
      $region10: #{gaussian_approx_loss.1} parent=5 // pred_check_branch
        %172 = sbr.rel (%p169) target = $region12
      $region11: #{gaussian_approx_loss.1} parent=5 // pred_region
        %s173 = ssub.s32 %s10, 1
        // Predicated region
        $region13: #{gaussian_approx_loss.1} parent=11 // pred_check
          %p174 = pneg %p43
        $region14: #{gaussian_approx_loss.1} parent=11 // pred_check_branch
          %176 = sbr.rel (%p174) target = $region16
        $region15: #{gaussian_approx_loss.1} parent=11 // pred_region
          _
        $region16: #{gaussian_approx_loss.1} parent=11 // pred_fallthru
          _
      $region12: #{gaussian_approx_loss.1} parent=5 // pred_fallthru
        _
      %p177 = scmp.lt.s32.totalorder %s10, 6
      // Predicated region
      $region17: #{gaussian_approx_loss.1} parent=5 // pred_check
        %p178 = pneg %p177
      $region18: #{gaussian_approx_loss.1} parent=5 // pred_check_branch
        %180 = sbr.rel (%p178) target = $region20
      $region19: #{gaussian_approx_loss.1} parent=5 // pred_region
        // Predicated region
        $region21: #{gaussian_approx_loss.1} parent=19 // pred_check
          %p181 = pneg %p67
        $region22: #{gaussian_approx_loss.1} parent=19 // pred_check_branch
          %183 = sbr.rel (%p181) target = $region24
        $region23: #{gaussian_approx_loss.1} parent=19 // pred_region
          %s184 = smul.u32 %s17, 3
          %s185 = sadd.s32 %s184, %s18
          %p186 = scmp.lt.s32.totalorder %s185, 5
          %s187 = scalar_select %p186, %s185, 5
          %s188 = smul.addr %s187, 8
          %s189 = scalar_lea.vmem %s1, %s188
          %s190 = smul.u32 %s17, 3
          %s191 = sadd.s32 %s190, %s18
        $region24: #{gaussian_approx_loss.1} parent=19 // pred_fallthru
          _
        // Predicated region
        $region25: #{gaussian_approx_loss.1} parent=19 // pred_check
          %p192 = pneg %p97
        $region26: #{gaussian_approx_loss.1} parent=19 // pred_check_branch
          %194 = sbr.rel (%p192) target = $region28
        $region27: #{gaussian_approx_loss.1} parent=19 // pred_region
          %s195 = sand.u32 %s87, 1
          %s196 = sand.u32 %s87, 1
          %s197 = smul.addr %s196, 768
          %s198 = scalar_lea.vmem [#allocation3], %s197
          %s199 = smul.u32 %s17, 3
          %s200 = sadd.s32 %s199, %s18
          %s201 = smul.u32 2, %s200
          %s202 = smul.addr %s201, 4
          %s203 = scalar_lea.vmem %s2, %s202
          // Predicated region
          $region29: #{gaussian_approx_loss.1} parent=27 // pred_check
            _
          $region30: #{gaussian_approx_loss.1} parent=27 // pred_check_branch
            %205 = sbr.rel (0) target = $region32
          $region31: #{gaussian_approx_loss.1} parent=27 // pred_region
            // Predicated region
            $region33: #{gaussian_approx_loss.1} parent=31 // pred_check
              _
            $region34: #{gaussian_approx_loss.1} parent=31 // pred_check_branch
              %207 = sbr.rel (0) target = $region36
            $region35: #{gaussian_approx_loss.1} parent=31 // pred_region
              // Predicated region
              $region48: #{gaussian_approx_loss.1} parent=35 // pred_check
                _
              $region49: #{gaussian_approx_loss.1} parent=35 // pred_check_branch
                %412 = sbr.rel (0) target = $region51
              $region50: #{gaussian_approx_loss.1} parent=35 // pred_region
                loop: start=0, step=1, limit=1
                $region52: #{gaussian_approx_loss.1} parent=50 // loop_pre_header
                  _
                $region53: #{gaussian_approx_loss.1} parent=50 // loop_header
                  %s414 = sphi 0, %s418
                  %p415 = scmp.ge.s32.totalorder %s414, 1
                  %s419 = sphi %s203, %s203
                  %s420 = sphi %s198, %s198
                $region54: #{gaussian_approx_loss.1} parent=50 // loop_header_branch
                  %417 = sbr.rel (%p415) target = $region58
                $region55: #{gaussian_approx_loss.1} parent=50 // loop_body
                  %v421 = vld [vmem:[%s419] sm:$0xff]
                  %422 = vst [vmem:[%s420] sm:$0xff] %v421
                  %v423 = vld [vmem:[%s419 + $0x30] sm:$0xff]
                  %424 = vst [vmem:[%s420 + $0x8] sm:$0xff] %v423
                  %v425 = vld [vmem:[%s419 + $0x60] sm:$0xff]
                  %426 = vst [vmem:[%s420 + $0x10] sm:$0xff] %v425
                  %v427 = vld [vmem:[%s419 + $0x90] sm:$0xff]
                  %428 = vst [vmem:[%s420 + $0x18] sm:$0xff] %v427
                  %v429 = vld [vmem:[%s419 + $0xc0] sm:$0xff]
                  %430 = vst [vmem:[%s420 + $0x20] sm:$0xff] %v429
                  %v431 = vld [vmem:[%s419 + $0xf0] sm:$0xff]
                  %432 = vst [vmem:[%s420 + $0x28] sm:$0xff] %v431
                  %v433 = vld [vmem:[%s419 + $0x120] sm:$0xff]
                  %434 = vst [vmem:[%s420 + $0x30] sm:$0xff] %v433
                  %v435 = vld [vmem:[%s419 + $0x150] sm:$0xff]
                  %436 = vst [vmem:[%s420 + $0x38] sm:$0xff] %v435
                  %v437 = vld [vmem:[%s419 + $0x180] sm:$0xff]
                  %438 = vst [vmem:[%s420 + $0x40] sm:$0xff] %v437
                  %v439 = vld [vmem:[%s419 + $0x1b0] sm:$0xff]
                  %440 = vst [vmem:[%s420 + $0x48] sm:$0xff] %v439
                  %v441 = vld [vmem:[%s419 + $0x1e0] sm:$0xff]
                  %442 = vst [vmem:[%s420 + $0x50] sm:$0xff] %v441
                  %v443 = vld [vmem:[%s419 + $0x210] sm:$0xff]
                  %444 = vst [vmem:[%s420 + $0x58] sm:$0xff] %v443
                  %v445 = vld [vmem:[%s419 + $0x240] sm:$0xff]
                  %446 = vst [vmem:[%s420 + $0x60] sm:$0xff] %v445
                  %v447 = vld [vmem:[%s419 + $0x270] sm:$0xff]
                  %448 = vst [vmem:[%s420 + $0x68] sm:$0xff] %v447
                  %v449 = vld [vmem:[%s419 + $0x2a0] sm:$0xff]
                  %450 = vst [vmem:[%s420 + $0x70] sm:$0xff] %v449
                  %v451 = vld [vmem:[%s419 + $0x2d0] sm:$0xff]
                  %452 = vst [vmem:[%s420 + $0x78] sm:$0xff] %v451
                  %v453 = vld [vmem:[%s419 + $0x300] sm:$0xff]
                  %454 = vst [vmem:[%s420 + $0x80] sm:$0xff] %v453
                  %v455 = vld [vmem:[%s419 + $0x330] sm:$0xff]
                  %456 = vst [vmem:[%s420 + $0x88] sm:$0xff] %v455
                  %v457 = vld [vmem:[%s419 + $0x360] sm:$0xff]
                  %458 = vst [vmem:[%s420 + $0x90] sm:$0xff] %v457
                  %v459 = vld [vmem:[%s419 + $0x390] sm:$0xff]
                  %460 = vst [vmem:[%s420 + $0x98] sm:$0xff] %v459
                  %v461 = vld [vmem:[%s419 + $0x3c0] sm:$0xff]
                  %462 = vst [vmem:[%s420 + $0xa0] sm:$0xff] %v461
                  %v463 = vld [vmem:[%s419 + $0x3f0] sm:$0xff]
                  %464 = vst [vmem:[%s420 + $0xa8] sm:$0xff] %v463
                  %v465 = vld [vmem:[%s419 + $0x420] sm:$0xff]
                  %466 = vst [vmem:[%s420 + $0xb0] sm:$0xff] %v465
                  %v467 = vld [vmem:[%s419 + $0x450] sm:$0xff]
                  %468 = vst [vmem:[%s420 + $0xb8] sm:$0xff] %v467
                  %v469 = vld [vmem:[%s419 + $0x480] sm:$0xff]
                  %470 = vst [vmem:[%s420 + $0xc0] sm:$0xff] %v469
                  %v471 = vld [vmem:[%s419 + $0x4b0] sm:$0xff]
                  %472 = vst [vmem:[%s420 + $0xc8] sm:$0xff] %v471
                  %v473 = vld [vmem:[%s419 + $0x4e0] sm:$0xff]
                  %474 = vst [vmem:[%s420 + $0xd0] sm:$0xff] %v473
                  %v475 = vld [vmem:[%s419 + $0x510] sm:$0xff]
                  %476 = vst [vmem:[%s420 + $0xd8] sm:$0xff] %v475
                  %v477 = vld [vmem:[%s419 + $0x540] sm:$0xff]
                  %478 = vst [vmem:[%s420 + $0xe0] sm:$0xff] %v477
                  %v479 = vld [vmem:[%s419 + $0x570] sm:$0xff]
                  %480 = vst [vmem:[%s420 + $0xe8] sm:$0xff] %v479
                  %v481 = vld [vmem:[%s419 + $0x5a0] sm:$0xff]
                  %482 = vst [vmem:[%s420 + $0xf0] sm:$0xff] %v481
                  %v483 = vld [vmem:[%s419 + $0x5d0] sm:$0xff]
                  %484 = vst [vmem:[%s420 + $0xf8] sm:$0xff] %v483
                  %v485 = vld [vmem:[%s419 + $0x600] sm:$0xff]
                  %486 = vst [vmem:[%s420 + $0x100] sm:$0xff] %v485
                  %v487 = vld [vmem:[%s419 + $0x630] sm:$0xff]
                  %488 = vst [vmem:[%s420 + $0x108] sm:$0xff] %v487
                  %v489 = vld [vmem:[%s419 + $0x660] sm:$0xff]
                  %490 = vst [vmem:[%s420 + $0x110] sm:$0xff] %v489
                  %v491 = vld [vmem:[%s419 + $0x690] sm:$0xff]
                  %492 = vst [vmem:[%s420 + $0x118] sm:$0xff] %v491
                  %v493 = vld [vmem:[%s419 + $0x6c0] sm:$0xff]
                  %494 = vst [vmem:[%s420 + $0x120] sm:$0xff] %v493
                  %v495 = vld [vmem:[%s419 + $0x6f0] sm:$0xff]
                  %496 = vst [vmem:[%s420 + $0x128] sm:$0xff] %v495
                  %v497 = vld [vmem:[%s419 + $0x720] sm:$0xff]
                  %498 = vst [vmem:[%s420 + $0x130] sm:$0xff] %v497
                  %v499 = vld [vmem:[%s419 + $0x750] sm:$0xff]
                  %500 = vst [vmem:[%s420 + $0x138] sm:$0xff] %v499
                  %v501 = vld [vmem:[%s419 + $0x780] sm:$0xff]
                  %502 = vst [vmem:[%s420 + $0x140] sm:$0xff] %v501
                  %v503 = vld [vmem:[%s419 + $0x7b0] sm:$0xff]
                  %504 = vst [vmem:[%s420 + $0x148] sm:$0xff] %v503
                  %v505 = vld [vmem:[%s419 + $0x7e0] sm:$0xff]
                  %506 = vst [vmem:[%s420 + $0x150] sm:$0xff] %v505
                  %v507 = vld [vmem:[%s419 + $0x810] sm:$0xff]
                  %508 = vst [vmem:[%s420 + $0x158] sm:$0xff] %v507
                  %v509 = vld [vmem:[%s419 + $0x840] sm:$0xff]
                  %510 = vst [vmem:[%s420 + $0x160] sm:$0xff] %v509
                  %v511 = vld [vmem:[%s419 + $0x870] sm:$0xff]
                  %512 = vst [vmem:[%s420 + $0x168] sm:$0xff] %v511
                  %v513 = vld [vmem:[%s419 + $0x8a0] sm:$0xff]
                  %514 = vst [vmem:[%s420 + $0x170] sm:$0xff] %v513
                  %v515 = vld [vmem:[%s419 + $0x8d0] sm:$0xff]
                  %516 = vst [vmem:[%s420 + $0x178] sm:$0xff] %v515
                  %v517 = vld [vmem:[%s419 + $0x900] sm:$0xff]
                  %518 = vst [vmem:[%s420 + $0x180] sm:$0xff] %v517
                  %v519 = vld [vmem:[%s419 + $0x930] sm:$0xff]
                  %520 = vst [vmem:[%s420 + $0x188] sm:$0xff] %v519
                  %v521 = vld [vmem:[%s419 + $0x960] sm:$0xff]
                  %522 = vst [vmem:[%s420 + $0x190] sm:$0xff] %v521
                  %v523 = vld [vmem:[%s419 + $0x990] sm:$0xff]
                  %524 = vst [vmem:[%s420 + $0x198] sm:$0xff] %v523
                  %v525 = vld [vmem:[%s419 + $0x9c0] sm:$0xff]
                  %526 = vst [vmem:[%s420 + $0x1a0] sm:$0xff] %v525
                  %v527 = vld [vmem:[%s419 + $0x9f0] sm:$0xff]
                  %528 = vst [vmem:[%s420 + $0x1a8] sm:$0xff] %v527
                  %v529 = vld [vmem:[%s419 + $0xa20] sm:$0xff]
                  %530 = vst [vmem:[%s420 + $0x1b0] sm:$0xff] %v529
                  %v531 = vld [vmem:[%s419 + $0xa50] sm:$0xff]
                  %532 = vst [vmem:[%s420 + $0x1b8] sm:$0xff] %v531
                  %v533 = vld [vmem:[%s419 + $0xa80] sm:$0xff]
                  %534 = vst [vmem:[%s420 + $0x1c0] sm:$0xff] %v533
                  %v535 = vld [vmem:[%s419 + $0xab0] sm:$0xff]
                  %536 = vst [vmem:[%s420 + $0x1c8] sm:$0xff] %v535
                  %v537 = vld [vmem:[%s419 + $0xae0] sm:$0xff]
                  %538 = vst [vmem:[%s420 + $0x1d0] sm:$0xff] %v537
                  %v539 = vld [vmem:[%s419 + $0xb10] sm:$0xff]
                  %540 = vst [vmem:[%s420 + $0x1d8] sm:$0xff] %v539
                  %v541 = vld [vmem:[%s419 + $0xb40] sm:$0xff]
                  %542 = vst [vmem:[%s420 + $0x1e0] sm:$0xff] %v541
                  %v543 = vld [vmem:[%s419 + $0xb70] sm:$0xff]
                  %544 = vst [vmem:[%s420 + $0x1e8] sm:$0xff] %v543
                  %v545 = vld [vmem:[%s419 + $0xba0] sm:$0xff]
                  %546 = vst [vmem:[%s420 + $0x1f0] sm:$0xff] %v545
                  %v547 = vld [vmem:[%s419 + $0xbd0] sm:$0xff]
                  %548 = vst [vmem:[%s420 + $0x1f8] sm:$0xff] %v547
                  %v549 = vld [vmem:[%s419 + $0xc00] sm:$0xff]
                  %550 = vst [vmem:[%s420 + $0x200] sm:$0xff] %v549
                  %v551 = vld [vmem:[%s419 + $0xc30] sm:$0xff]
                  %552 = vst [vmem:[%s420 + $0x208] sm:$0xff] %v551
                  %v553 = vld [vmem:[%s419 + $0xc60] sm:$0xff]
                  %554 = vst [vmem:[%s420 + $0x210] sm:$0xff] %v553
                  %v555 = vld [vmem:[%s419 + $0xc90] sm:$0xff]
                  %556 = vst [vmem:[%s420 + $0x218] sm:$0xff] %v555
                  %v557 = vld [vmem:[%s419 + $0xcc0] sm:$0xff]
                  %558 = vst [vmem:[%s420 + $0x220] sm:$0xff] %v557
                  %v559 = vld [vmem:[%s419 + $0xcf0] sm:$0xff]
                  %560 = vst [vmem:[%s420 + $0x228] sm:$0xff] %v559
                  %v561 = vld [vmem:[%s419 + $0xd20] sm:$0xff]
                  %562 = vst [vmem:[%s420 + $0x230] sm:$0xff] %v561
                  %v563 = vld [vmem:[%s419 + $0xd50] sm:$0xff]
                  %564 = vst [vmem:[%s420 + $0x238] sm:$0xff] %v563
                  %v565 = vld [vmem:[%s419 + $0xd80] sm:$0xff]
                  %566 = vst [vmem:[%s420 + $0x240] sm:$0xff] %v565
                  %v567 = vld [vmem:[%s419 + $0xdb0] sm:$0xff]
                  %568 = vst [vmem:[%s420 + $0x248] sm:$0xff] %v567
                  %v569 = vld [vmem:[%s419 + $0xde0] sm:$0xff]
                  %570 = vst [vmem:[%s420 + $0x250] sm:$0xff] %v569
                  %v571 = vld [vmem:[%s419 + $0xe10] sm:$0xff]
                  %572 = vst [vmem:[%s420 + $0x258] sm:$0xff] %v571
                  %v573 = vld [vmem:[%s419 + $0xe40] sm:$0xff]
                  %574 = vst [vmem:[%s420 + $0x260] sm:$0xff] %v573
                  %v575 = vld [vmem:[%s419 + $0xe70] sm:$0xff]
                  %576 = vst [vmem:[%s420 + $0x268] sm:$0xff] %v575
                  %v577 = vld [vmem:[%s419 + $0xea0] sm:$0xff]
                  %578 = vst [vmem:[%s420 + $0x270] sm:$0xff] %v577
                  %v579 = vld [vmem:[%s419 + $0xed0] sm:$0xff]
                  %580 = vst [vmem:[%s420 + $0x278] sm:$0xff] %v579
                  %v581 = vld [vmem:[%s419 + $0xf00] sm:$0xff]
                  %582 = vst [vmem:[%s420 + $0x280] sm:$0xff] %v581
                  %v583 = vld [vmem:[%s419 + $0xf30] sm:$0xff]
                  %584 = vst [vmem:[%s420 + $0x288] sm:$0xff] %v583
                  %v585 = vld [vmem:[%s419 + $0xf60] sm:$0xff]
                  %586 = vst [vmem:[%s420 + $0x290] sm:$0xff] %v585
                  %v587 = vld [vmem:[%s419 + $0xf90] sm:$0xff]
                  %588 = vst [vmem:[%s420 + $0x298] sm:$0xff] %v587
                  %v589 = vld [vmem:[%s419 + $0xfc0] sm:$0xff]
                  %590 = vst [vmem:[%s420 + $0x2a0] sm:$0xff] %v589
                  %v591 = vld [vmem:[%s419 + $0xff0] sm:$0xff]
                  %592 = vst [vmem:[%s420 + $0x2a8] sm:$0xff] %v591
                  %v593 = vld [vmem:[%s419 + $0x1020] sm:$0xff]
                  %594 = vst [vmem:[%s420 + $0x2b0] sm:$0xff] %v593
                  %v595 = vld [vmem:[%s419 + $0x1050] sm:$0xff]
                  %596 = vst [vmem:[%s420 + $0x2b8] sm:$0xff] %v595
                  %v597 = vld [vmem:[%s419 + $0x1080] sm:$0xff]
                  %598 = vst [vmem:[%s420 + $0x2c0] sm:$0xff] %v597
                  %v599 = vld [vmem:[%s419 + $0x10b0] sm:$0xff]
                  %600 = vst [vmem:[%s420 + $0x2c8] sm:$0xff] %v599
                  %v601 = vld [vmem:[%s419 + $0x10e0] sm:$0xff]
                  %602 = vst [vmem:[%s420 + $0x2d0] sm:$0xff] %v601
                  %v603 = vld [vmem:[%s419 + $0x1110] sm:$0xff]
                  %604 = vst [vmem:[%s420 + $0x2d8] sm:$0xff] %v603
                  %v605 = vld [vmem:[%s419 + $0x1140] sm:$0xff]
                  %606 = vst [vmem:[%s420 + $0x2e0] sm:$0xff] %v605
                  %v607 = vld [vmem:[%s419 + $0x1170] sm:$0xff]
                  %608 = vst [vmem:[%s420 + $0x2e8] sm:$0xff] %v607
                  %v609 = vld [vmem:[%s419 + $0x11a0] sm:$0xff]
                  %610 = vst [vmem:[%s420 + $0x2f0] sm:$0xff] %v609
                  %v611 = vld [vmem:[%s419 + $0x11d0] sm:$0xff]
                  %612 = vst [vmem:[%s420 + $0x2f8] sm:$0xff] %v611
                $region56: #{gaussian_approx_loss.1} parent=50 // loop_footer
                  %s418 = sadd.s32 1, %s414
                $region57: #{gaussian_approx_loss.1} parent=50 // loop_footer_branch
                  %413 = sbr.rel target = $region53
                $region58: #{gaussian_approx_loss.1} parent=50 // loop_exit
                  _
              $region51: #{gaussian_approx_loss.1} parent=35 // pred_fallthru
                _
              // Predicated region
              $region59: #{gaussian_approx_loss.1} parent=35 // pred_check
                _
              $region60: #{gaussian_approx_loss.1} parent=35 // pred_check_branch
                %614 = sbr.rel target = $region62
              $region61: #{gaussian_approx_loss.1} parent=35 // pred_region
                _
              $region62: #{gaussian_approx_loss.1} parent=35 // pred_fallthru
                _
            $region36: #{gaussian_approx_loss.1} parent=31 // pred_fallthru
              _
            // Predicated region
            $region37: #{gaussian_approx_loss.1} parent=31 // pred_check
              _
            $region38: #{gaussian_approx_loss.1} parent=31 // pred_check_branch
              %209 = sbr.rel target = $region40
            $region39: #{gaussian_approx_loss.1} parent=31 // pred_region
              loop: start=0, step=1, limit=1
              $region41: #{gaussian_approx_loss.1} parent=39 // loop_pre_header
                _
              $region42: #{gaussian_approx_loss.1} parent=39 // loop_header
                %s212 = sphi 0, %s216
                %p213 = scmp.ge.s32.totalorder %s212, 1
                %s217 = sphi %s203, %s203
                %s218 = sphi %s198, %s198
              $region43: #{gaussian_approx_loss.1} parent=39 // loop_header_branch
                %215 = sbr.rel (%p213) target = $region47
              $region44: #{gaussian_approx_loss.1} parent=39 // loop_body
                %v219 = vld [vmem:[%s217] sm:$0xff]
                %220 = vst [vmem:[%s218] sm:$0xff] %v219
                %v221 = vld [vmem:[%s217 + $0x30] sm:$0xff]
                %222 = vst [vmem:[%s218 + $0x8] sm:$0xff] %v221
                %v223 = vld [vmem:[%s217 + $0x60] sm:$0xff]
                %224 = vst [vmem:[%s218 + $0x10] sm:$0xff] %v223
                %v225 = vld [vmem:[%s217 + $0x90] sm:$0xff]
                %226 = vst [vmem:[%s218 + $0x18] sm:$0xff] %v225
                %v227 = vld [vmem:[%s217 + $0xc0] sm:$0xff]
                %228 = vst [vmem:[%s218 + $0x20] sm:$0xff] %v227
                %v229 = vld [vmem:[%s217 + $0xf0] sm:$0xff]
                %230 = vst [vmem:[%s218 + $0x28] sm:$0xff] %v229
                %v231 = vld [vmem:[%s217 + $0x120] sm:$0xff]
                %232 = vst [vmem:[%s218 + $0x30] sm:$0xff] %v231
                %v233 = vld [vmem:[%s217 + $0x150] sm:$0xff]
                %234 = vst [vmem:[%s218 + $0x38] sm:$0xff] %v233
                %v235 = vld [vmem:[%s217 + $0x180] sm:$0xff]
                %236 = vst [vmem:[%s218 + $0x40] sm:$0xff] %v235
                %v237 = vld [vmem:[%s217 + $0x1b0] sm:$0xff]
                %238 = vst [vmem:[%s218 + $0x48] sm:$0xff] %v237
                %v239 = vld [vmem:[%s217 + $0x1e0] sm:$0xff]
                %240 = vst [vmem:[%s218 + $0x50] sm:$0xff] %v239
                %v241 = vld [vmem:[%s217 + $0x210] sm:$0xff]
                %242 = vst [vmem:[%s218 + $0x58] sm:$0xff] %v241
                %v243 = vld [vmem:[%s217 + $0x240] sm:$0xff]
                %244 = vst [vmem:[%s218 + $0x60] sm:$0xff] %v243
                %v245 = vld [vmem:[%s217 + $0x270] sm:$0xff]
                %246 = vst [vmem:[%s218 + $0x68] sm:$0xff] %v245
                %v247 = vld [vmem:[%s217 + $0x2a0] sm:$0xff]
                %248 = vst [vmem:[%s218 + $0x70] sm:$0xff] %v247
                %v249 = vld [vmem:[%s217 + $0x2d0] sm:$0xff]
                %250 = vst [vmem:[%s218 + $0x78] sm:$0xff] %v249
                %v251 = vld [vmem:[%s217 + $0x300] sm:$0xff]
                %252 = vst [vmem:[%s218 + $0x80] sm:$0xff] %v251
                %v253 = vld [vmem:[%s217 + $0x330] sm:$0xff]
                %254 = vst [vmem:[%s218 + $0x88] sm:$0xff] %v253
                %v255 = vld [vmem:[%s217 + $0x360] sm:$0xff]
                %256 = vst [vmem:[%s218 + $0x90] sm:$0xff] %v255
                %v257 = vld [vmem:[%s217 + $0x390] sm:$0xff]
                %258 = vst [vmem:[%s218 + $0x98] sm:$0xff] %v257
                %v259 = vld [vmem:[%s217 + $0x3c0] sm:$0xff]
                %260 = vst [vmem:[%s218 + $0xa0] sm:$0xff] %v259
                %v261 = vld [vmem:[%s217 + $0x3f0] sm:$0xff]
                %262 = vst [vmem:[%s218 + $0xa8] sm:$0xff] %v261
                %v263 = vld [vmem:[%s217 + $0x420] sm:$0xff]
                %264 = vst [vmem:[%s218 + $0xb0] sm:$0xff] %v263
                %v265 = vld [vmem:[%s217 + $0x450] sm:$0xff]
                %266 = vst [vmem:[%s218 + $0xb8] sm:$0xff] %v265
                %v267 = vld [vmem:[%s217 + $0x480] sm:$0xff]
                %268 = vst [vmem:[%s218 + $0xc0] sm:$0xff] %v267
                %v269 = vld [vmem:[%s217 + $0x4b0] sm:$0xff]
                %270 = vst [vmem:[%s218 + $0xc8] sm:$0xff] %v269
                %v271 = vld [vmem:[%s217 + $0x4e0] sm:$0xff]
                %272 = vst [vmem:[%s218 + $0xd0] sm:$0xff] %v271
                %v273 = vld [vmem:[%s217 + $0x510] sm:$0xff]
                %274 = vst [vmem:[%s218 + $0xd8] sm:$0xff] %v273
                %v275 = vld [vmem:[%s217 + $0x540] sm:$0xff]
                %276 = vst [vmem:[%s218 + $0xe0] sm:$0xff] %v275
                %v277 = vld [vmem:[%s217 + $0x570] sm:$0xff]
                %278 = vst [vmem:[%s218 + $0xe8] sm:$0xff] %v277
                %v279 = vld [vmem:[%s217 + $0x5a0] sm:$0xff]
                %280 = vst [vmem:[%s218 + $0xf0] sm:$0xff] %v279
                %v281 = vld [vmem:[%s217 + $0x5d0] sm:$0xff]
                %282 = vst [vmem:[%s218 + $0xf8] sm:$0xff] %v281
                %v283 = vld [vmem:[%s217 + $0x600] sm:$0xff]
                %284 = vst [vmem:[%s218 + $0x100] sm:$0xff] %v283
                %v285 = vld [vmem:[%s217 + $0x630] sm:$0xff]
                %286 = vst [vmem:[%s218 + $0x108] sm:$0xff] %v285
                %v287 = vld [vmem:[%s217 + $0x660] sm:$0xff]
                %288 = vst [vmem:[%s218 + $0x110] sm:$0xff] %v287
                %v289 = vld [vmem:[%s217 + $0x690] sm:$0xff]
                %290 = vst [vmem:[%s218 + $0x118] sm:$0xff] %v289
                %v291 = vld [vmem:[%s217 + $0x6c0] sm:$0xff]
                %292 = vst [vmem:[%s218 + $0x120] sm:$0xff] %v291
                %v293 = vld [vmem:[%s217 + $0x6f0] sm:$0xff]
                %294 = vst [vmem:[%s218 + $0x128] sm:$0xff] %v293
                %v295 = vld [vmem:[%s217 + $0x720] sm:$0xff]
                %296 = vst [vmem:[%s218 + $0x130] sm:$0xff] %v295
                %v297 = vld [vmem:[%s217 + $0x750] sm:$0xff]
                %298 = vst [vmem:[%s218 + $0x138] sm:$0xff] %v297
                %v299 = vld [vmem:[%s217 + $0x780] sm:$0xff]
                %300 = vst [vmem:[%s218 + $0x140] sm:$0xff] %v299
                %v301 = vld [vmem:[%s217 + $0x7b0] sm:$0xff]
                %302 = vst [vmem:[%s218 + $0x148] sm:$0xff] %v301
                %v303 = vld [vmem:[%s217 + $0x7e0] sm:$0xff]
                %304 = vst [vmem:[%s218 + $0x150] sm:$0xff] %v303
                %v305 = vld [vmem:[%s217 + $0x810] sm:$0xff]
                %306 = vst [vmem:[%s218 + $0x158] sm:$0xff] %v305
                %v307 = vld [vmem:[%s217 + $0x840] sm:$0xff]
                %308 = vst [vmem:[%s218 + $0x160] sm:$0xff] %v307
                %v309 = vld [vmem:[%s217 + $0x870] sm:$0xff]
                %310 = vst [vmem:[%s218 + $0x168] sm:$0xff] %v309
                %v311 = vld [vmem:[%s217 + $0x8a0] sm:$0xff]
                %312 = vst [vmem:[%s218 + $0x170] sm:$0xff] %v311
                %v313 = vld [vmem:[%s217 + $0x8d0] sm:$0xff]
                %314 = vst [vmem:[%s218 + $0x178] sm:$0xff] %v313
                %v315 = vld [vmem:[%s217 + $0x900] sm:$0xff]
                %316 = vst [vmem:[%s218 + $0x180] sm:$0xff] %v315
                %v317 = vld [vmem:[%s217 + $0x930] sm:$0xff]
                %318 = vst [vmem:[%s218 + $0x188] sm:$0xff] %v317
                %v319 = vld [vmem:[%s217 + $0x960] sm:$0xff]
                %320 = vst [vmem:[%s218 + $0x190] sm:$0xff] %v319
                %v321 = vld [vmem:[%s217 + $0x990] sm:$0xff]
                %322 = vst [vmem:[%s218 + $0x198] sm:$0xff] %v321
                %v323 = vld [vmem:[%s217 + $0x9c0] sm:$0xff]
                %324 = vst [vmem:[%s218 + $0x1a0] sm:$0xff] %v323
                %v325 = vld [vmem:[%s217 + $0x9f0] sm:$0xff]
                %326 = vst [vmem:[%s218 + $0x1a8] sm:$0xff] %v325
                %v327 = vld [vmem:[%s217 + $0xa20] sm:$0xff]
                %328 = vst [vmem:[%s218 + $0x1b0] sm:$0xff] %v327
                %v329 = vld [vmem:[%s217 + $0xa50] sm:$0xff]
                %330 = vst [vmem:[%s218 + $0x1b8] sm:$0xff] %v329
                %v331 = vld [vmem:[%s217 + $0xa80] sm:$0xff]
                %332 = vst [vmem:[%s218 + $0x1c0] sm:$0xff] %v331
                %v333 = vld [vmem:[%s217 + $0xab0] sm:$0xff]
                %334 = vst [vmem:[%s218 + $0x1c8] sm:$0xff] %v333
                %v335 = vld [vmem:[%s217 + $0xae0] sm:$0xff]
                %336 = vst [vmem:[%s218 + $0x1d0] sm:$0xff] %v335
                %v337 = vld [vmem:[%s217 + $0xb10] sm:$0xff]
                %338 = vst [vmem:[%s218 + $0x1d8] sm:$0xff] %v337
                %v339 = vld [vmem:[%s217 + $0xb40] sm:$0xff]
                %340 = vst [vmem:[%s218 + $0x1e0] sm:$0xff] %v339
                %v341 = vld [vmem:[%s217 + $0xb70] sm:$0xff]
                %342 = vst [vmem:[%s218 + $0x1e8] sm:$0xff] %v341
                %v343 = vld [vmem:[%s217 + $0xba0] sm:$0xff]
                %344 = vst [vmem:[%s218 + $0x1f0] sm:$0xff] %v343
                %v345 = vld [vmem:[%s217 + $0xbd0] sm:$0xff]
                %346 = vst [vmem:[%s218 + $0x1f8] sm:$0xff] %v345
                %v347 = vld [vmem:[%s217 + $0xc00] sm:$0xff]
                %348 = vst [vmem:[%s218 + $0x200] sm:$0xff] %v347
                %v349 = vld [vmem:[%s217 + $0xc30] sm:$0xff]
                %350 = vst [vmem:[%s218 + $0x208] sm:$0xff] %v349
                %v351 = vld [vmem:[%s217 + $0xc60] sm:$0xff]
                %352 = vst [vmem:[%s218 + $0x210] sm:$0xff] %v351
                %v353 = vld [vmem:[%s217 + $0xc90] sm:$0xff]
                %354 = vst [vmem:[%s218 + $0x218] sm:$0xff] %v353
                %v355 = vld [vmem:[%s217 + $0xcc0] sm:$0xff]
                %356 = vst [vmem:[%s218 + $0x220] sm:$0xff] %v355
                %v357 = vld [vmem:[%s217 + $0xcf0] sm:$0xff]
                %358 = vst [vmem:[%s218 + $0x228] sm:$0xff] %v357
                %v359 = vld [vmem:[%s217 + $0xd20] sm:$0xff]
                %360 = vst [vmem:[%s218 + $0x230] sm:$0xff] %v359
                %v361 = vld [vmem:[%s217 + $0xd50] sm:$0xff]
                %362 = vst [vmem:[%s218 + $0x238] sm:$0xff] %v361
                %v363 = vld [vmem:[%s217 + $0xd80] sm:$0xff]
                %364 = vst [vmem:[%s218 + $0x240] sm:$0xff] %v363
                %v365 = vld [vmem:[%s217 + $0xdb0] sm:$0xff]
                %366 = vst [vmem:[%s218 + $0x248] sm:$0xff] %v365
                %v367 = vld [vmem:[%s217 + $0xde0] sm:$0xff]
                %368 = vst [vmem:[%s218 + $0x250] sm:$0xff] %v367
                %v369 = vld [vmem:[%s217 + $0xe10] sm:$0xff]
                %370 = vst [vmem:[%s218 + $0x258] sm:$0xff] %v369
                %v371 = vld [vmem:[%s217 + $0xe40] sm:$0xff]
                %372 = vst [vmem:[%s218 + $0x260] sm:$0xff] %v371
                %v373 = vld [vmem:[%s217 + $0xe70] sm:$0xff]
                %374 = vst [vmem:[%s218 + $0x268] sm:$0xff] %v373
                %v375 = vld [vmem:[%s217 + $0xea0] sm:$0xff]
                %376 = vst [vmem:[%s218 + $0x270] sm:$0xff] %v375
                %v377 = vld [vmem:[%s217 + $0xed0] sm:$0xff]
                %378 = vst [vmem:[%s218 + $0x278] sm:$0xff] %v377
                %v379 = vld [vmem:[%s217 + $0xf00] sm:$0xff]
                %380 = vst [vmem:[%s218 + $0x280] sm:$0xff] %v379
                %v381 = vld [vmem:[%s217 + $0xf30] sm:$0xff]
                %382 = vst [vmem:[%s218 + $0x288] sm:$0xff] %v381
                %v383 = vld [vmem:[%s217 + $0xf60] sm:$0xff]
                %384 = vst [vmem:[%s218 + $0x290] sm:$0xff] %v383
                %v385 = vld [vmem:[%s217 + $0xf90] sm:$0xff]
                %386 = vst [vmem:[%s218 + $0x298] sm:$0xff] %v385
                %v387 = vld [vmem:[%s217 + $0xfc0] sm:$0xff]
                %388 = vst [vmem:[%s218 + $0x2a0] sm:$0xff] %v387
                %v389 = vld [vmem:[%s217 + $0xff0] sm:$0xff]
                %390 = vst [vmem:[%s218 + $0x2a8] sm:$0xff] %v389
                %v391 = vld [vmem:[%s217 + $0x1020] sm:$0xff]
                %392 = vst [vmem:[%s218 + $0x2b0] sm:$0xff] %v391
                %v393 = vld [vmem:[%s217 + $0x1050] sm:$0xff]
                %394 = vst [vmem:[%s218 + $0x2b8] sm:$0xff] %v393
                %v395 = vld [vmem:[%s217 + $0x1080] sm:$0xff]
                %396 = vst [vmem:[%s218 + $0x2c0] sm:$0xff] %v395
                %v397 = vld [vmem:[%s217 + $0x10b0] sm:$0xff]
                %398 = vst [vmem:[%s218 + $0x2c8] sm:$0xff] %v397
                %v399 = vld [vmem:[%s217 + $0x10e0] sm:$0xff]
                %400 = vst [vmem:[%s218 + $0x2d0] sm:$0xff] %v399
                %v401 = vld [vmem:[%s217 + $0x1110] sm:$0xff]
                %402 = vst [vmem:[%s218 + $0x2d8] sm:$0xff] %v401
                %v403 = vld [vmem:[%s217 + $0x1140] sm:$0xff]
                %404 = vst [vmem:[%s218 + $0x2e0] sm:$0xff] %v403
                %v405 = vld [vmem:[%s217 + $0x1170] sm:$0xff]
                %406 = vst [vmem:[%s218 + $0x2e8] sm:$0xff] %v405
                %v407 = vld [vmem:[%s217 + $0x11a0] sm:$0xff]
                %408 = vst [vmem:[%s218 + $0x2f0] sm:$0xff] %v407
                %v409 = vld [vmem:[%s217 + $0x11d0] sm:$0xff]
                %410 = vst [vmem:[%s218 + $0x2f8] sm:$0xff] %v409
              $region45: #{gaussian_approx_loss.1} parent=39 // loop_footer
                %s216 = sadd.s32 1, %s212
              $region46: #{gaussian_approx_loss.1} parent=39 // loop_footer_branch
                %211 = sbr.rel target = $region42
              $region47: #{gaussian_approx_loss.1} parent=39 // loop_exit
                _
            $region40: #{gaussian_approx_loss.1} parent=31 // pred_fallthru
              _
          $region32: #{gaussian_approx_loss.1} parent=27 // pred_fallthru
            _
          %615 = vnop
        $region28: #{gaussian_approx_loss.1} parent=19 // pred_fallthru
          _
        // Predicated region
        $region63: #{gaussian_approx_loss.1} parent=19 // pred_check
          %p616 = pneg %p127
        $region64: #{gaussian_approx_loss.1} parent=19 // pred_check_branch
          %618 = sbr.rel (%p616) target = $region66
        $region65: #{gaussian_approx_loss.1} parent=19 // pred_region
          %s619 = smul.u32 %s17, 3
          %s620 = sadd.s32 %s619, %s18
          %s621 = smul.u32 2, %s620
          %p622 = scmp.lt.s32.totalorder %s621, 11
          %s623 = scalar_select %p622, %s621, 11
          %s624 = scalar_lea.vmem %s3, %s623
          %s625 = smul.u32 %s17, 3
          %s626 = sadd.s32 %s625, %s18
          %s627 = smul.u32 2, %s626
        $region66: #{gaussian_approx_loss.1} parent=19 // pred_fallthru
          _
      $region20: #{gaussian_approx_loss.1} parent=5 // pred_fallthru
        _
      %p628 = scmp.le.s32.totalorder 1, %s10
      %p629 = scmp.lt.s32.totalorder %s10, 7
      %p630 = pnand %p628, %p629
      %p631 = pneg %p630
      // Predicated region
      $region67: #{gaussian_approx_loss.1} parent=5 // pred_check
        _
      $region68: #{gaussian_approx_loss.1} parent=5 // pred_check_branch
        %633 = sbr.rel (%p630) target = $region70
      $region69: #{gaussian_approx_loss.1} parent=5 // pred_region
        %s634 = ssub.s32 %s10, 1
        %s635 = sand.u32 %s90, 1
        %s636 = sand.u32 %s90, 1
        %s637 = smul.addr %s636, 768
        %s638 = scalar_lea.vmem [#allocation3], %s637
        // Predicated region
        $region71: #{gaussian_approx_loss.1} parent=69 // pred_check
          %p639 = pneg %p103
        $region72: #{gaussian_approx_loss.1} parent=69 // pred_check_branch
          %641 = sbr.rel (%p639) target = $region74
        $region73: #{gaussian_approx_loss.1} parent=69 // pred_region
          _
        $region74: #{gaussian_approx_loss.1} parent=69 // pred_fallthru
          _
        %p642 = pneg %p43
        %p643 = pneg %p40
        %s644 = smul.u32 %s19, 3
        %s645 = sadd.s32 %s644, %s20
        %p646 = scmp.lt.s32.totalorder %s645, 5
        %s647 = scalar_select %p646, %s645, 5
        %s648 = smul.addr %s647, 8
        %s649 = scalar_lea.vmem %s1, %s648
        %p650 = pneg %p73
        %p651 = pneg %p70
        %s652 = sand.u32 %s90, 1
        %s653 = sand.u32 %s90, 1
        %s654 = smul.addr %s653, 768
        %s655 = scalar_lea.vmem [#allocation3], %s654
        %p656 = pneg %p103
        %p657 = pneg %p100
        %s658 = smul.u32 %s19, 3
        %s659 = sadd.s32 %s658, %s20
        %s660 = smul.u32 2, %s659
        %p661 = scmp.lt.s32.totalorder %s660, 11
        %s662 = scalar_select %p661, %s660, 11
        %s663 = scalar_lea.vmem %s3, %s662
        %p664 = pneg %p133
        %p665 = pneg %p130
        %p666 = pneg %p159
        %p667 = pneg %p156
        %p668 = scmp.lt.s32.totalorder %s19, 1
        %s669 = scalar_select %p668, %s19, 1
        %s670 = smul.addr %s669, 8
        %s671 = scalar_lea.vmem %s4, %s670
        %s672 = smul.u32 %s19, 3
        %s673 = sadd.s32 %s672, %s20
        %p674 = scmp.lt.s32.totalorder %s673, 5
        %s675 = scalar_select %p674, %s673, 5
        %s676 = smul.addr %s675, 8
        %s677 = scalar_lea.vmem %s1, %s676
        %s678 = smul.u32 %s19, 3
        %s679 = sadd.s32 %s678, %s20
        %s680 = smul.u32 %s19, 3
        %s681 = sadd.s32 %s680, %s20
        %s682 = smul.u32 2, %s681
        %s683 = smul.u32 %s19, 3
        %s684 = sadd.s32 %s683, %s20
        %s685 = smul.u32 2, %s684
        %p686 = scmp.lt.s32.totalorder %s685, 11
        %s687 = scalar_select %p686, %s685, 11
        %s688 = scalar_lea.vmem %s3, %s687
        %s689 = smul.u32 %s19, 3
        %s690 = sadd.s32 %s689, %s20
        %s691 = smul.u32 2, %s690
        %p692 = scmp.lt.s32.totalorder %s19, 1
        %s693 = scalar_select %p692, %s19, 1
        %s694 = smul.addr %s693, 8
        %s695 = scalar_lea.vmem %s4, %s694
        %p696 = scmp.eq.s32.totalorder %s20, 0
        // Predicated region
        $region75: #{gaussian_approx_loss.1} parent=69 // pred_check
          %p697 = pneg %p696
        $region76: #{gaussian_approx_loss.1} parent=69 // pred_check_branch
          %699 = sbr.rel (%p697) target = $region78
        $region77: #{gaussian_approx_loss.1} parent=69 // pred_region
          %vm700 = vcmask 0
          %701 = vst.msk [vmem:[#allocation2] sm:$0x1] %vm700, 0.0
        $region78: #{gaussian_approx_loss.1} parent=69 // pred_fallthru
          _
        %v702 = vld [vmem:[%s0] sm:$0xff]
        %v703 = vld [vmem:[%s0 + $0x8] sm:$0xff]
        %v704 = vld [vmem:[%s0 + $0x10] sm:$0xff]
        %v705 = vld [vmem:[%s0 + $0x18] sm:$0xff]
        %v706 = vld [vmem:[%s0 + $0x20] sm:$0xff]
        %v707 = vld [vmem:[%s0 + $0x28] sm:$0xff]
        %v708 = vpack.c.bf16 %v702, %v702
        %v709 = vpack.c.bf16 %v703, %v703
        %v710 = vpack.c.bf16 %v704, %v704
        %v711 = vpack.c.bf16 %v705, %v705
        %v712 = vpack.c.bf16 %v706, %v706
        %v713 = vpack.c.bf16 %v707, %v707
        %v714 = vld [vmem:[%s638] sm:$0xff]
        %v715 = vld [vmem:[%s638 + $0x8] sm:$0xff]
        %v716 = vld [vmem:[%s638 + $0x10] sm:$0xff]
        %v717 = vld [vmem:[%s638 + $0x18] sm:$0xff]
        %v718 = vld [vmem:[%s638 + $0x20] sm:$0xff]
        %v719 = vld [vmem:[%s638 + $0x28] sm:$0xff]
        %v720 = vld [vmem:[%s638 + $0x30] sm:$0xff]
        %v721 = vld [vmem:[%s638 + $0x38] sm:$0xff]
        %v722 = vld [vmem:[%s638 + $0x40] sm:$0xff]
        %v723 = vld [vmem:[%s638 + $0x48] sm:$0xff]
        %v724 = vld [vmem:[%s638 + $0x50] sm:$0xff]
        %v725 = vld [vmem:[%s638 + $0x58] sm:$0xff]
        %v726 = vld [vmem:[%s638 + $0x60] sm:$0xff]
        %v727 = vld [vmem:[%s638 + $0x68] sm:$0xff]
        %v728 = vld [vmem:[%s638 + $0x70] sm:$0xff]
        %v729 = vld [vmem:[%s638 + $0x78] sm:$0xff]
        %v730 = vld [vmem:[%s638 + $0x80] sm:$0xff]
        %v731 = vld [vmem:[%s638 + $0x88] sm:$0xff]
        %v732 = vld [vmem:[%s638 + $0x90] sm:$0xff]
        %v733 = vld [vmem:[%s638 + $0x98] sm:$0xff]
        %v734 = vld [vmem:[%s638 + $0xa0] sm:$0xff]
        %v735 = vld [vmem:[%s638 + $0xa8] sm:$0xff]
        %v736 = vld [vmem:[%s638 + $0xb0] sm:$0xff]
        %v737 = vld [vmem:[%s638 + $0xb8] sm:$0xff]
        %v738 = vld [vmem:[%s638 + $0xc0] sm:$0xff]
        %v739 = vld [vmem:[%s638 + $0xc8] sm:$0xff]
        %v740 = vld [vmem:[%s638 + $0xd0] sm:$0xff]
        %v741 = vld [vmem:[%s638 + $0xd8] sm:$0xff]
        %v742 = vld [vmem:[%s638 + $0xe0] sm:$0xff]
        %v743 = vld [vmem:[%s638 + $0xe8] sm:$0xff]
        %v744 = vld [vmem:[%s638 + $0xf0] sm:$0xff]
        %v745 = vld [vmem:[%s638 + $0xf8] sm:$0xff]
        %v746 = vld [vmem:[%s638 + $0x100] sm:$0xff]
        %v747 = vld [vmem:[%s638 + $0x108] sm:$0xff]
        %v748 = vld [vmem:[%s638 + $0x110] sm:$0xff]
        %v749 = vld [vmem:[%s638 + $0x118] sm:$0xff]
        %v750 = vld [vmem:[%s638 + $0x120] sm:$0xff]
        %v751 = vld [vmem:[%s638 + $0x128] sm:$0xff]
        %v752 = vld [vmem:[%s638 + $0x130] sm:$0xff]
        %v753 = vld [vmem:[%s638 + $0x138] sm:$0xff]
        %v754 = vld [vmem:[%s638 + $0x140] sm:$0xff]
        %v755 = vld [vmem:[%s638 + $0x148] sm:$0xff]
        %v756 = vld [vmem:[%s638 + $0x150] sm:$0xff]
        %v757 = vld [vmem:[%s638 + $0x158] sm:$0xff]
        %v758 = vld [vmem:[%s638 + $0x160] sm:$0xff]
        %v759 = vld [vmem:[%s638 + $0x168] sm:$0xff]
        %v760 = vld [vmem:[%s638 + $0x170] sm:$0xff]
        %v761 = vld [vmem:[%s638 + $0x178] sm:$0xff]
        %v762 = vld [vmem:[%s638 + $0x180] sm:$0xff]
        %v763 = vld [vmem:[%s638 + $0x188] sm:$0xff]
        %v764 = vld [vmem:[%s638 + $0x190] sm:$0xff]
        %v765 = vld [vmem:[%s638 + $0x198] sm:$0xff]
        %v766 = vld [vmem:[%s638 + $0x1a0] sm:$0xff]
        %v767 = vld [vmem:[%s638 + $0x1a8] sm:$0xff]
        %v768 = vld [vmem:[%s638 + $0x1b0] sm:$0xff]
        %v769 = vld [vmem:[%s638 + $0x1b8] sm:$0xff]
        %v770 = vld [vmem:[%s638 + $0x1c0] sm:$0xff]
        %v771 = vld [vmem:[%s638 + $0x1c8] sm:$0xff]
        %v772 = vld [vmem:[%s638 + $0x1d0] sm:$0xff]
        %v773 = vld [vmem:[%s638 + $0x1d8] sm:$0xff]
        %v774 = vld [vmem:[%s638 + $0x1e0] sm:$0xff]
        %v775 = vld [vmem:[%s638 + $0x1e8] sm:$0xff]
        %v776 = vld [vmem:[%s638 + $0x1f0] sm:$0xff]
        %v777 = vld [vmem:[%s638 + $0x1f8] sm:$0xff]
        %v778 = vld [vmem:[%s638 + $0x200] sm:$0xff]
        %v779 = vld [vmem:[%s638 + $0x208] sm:$0xff]
        %v780 = vld [vmem:[%s638 + $0x210] sm:$0xff]
        %v781 = vld [vmem:[%s638 + $0x218] sm:$0xff]
        %v782 = vld [vmem:[%s638 + $0x220] sm:$0xff]
        %v783 = vld [vmem:[%s638 + $0x228] sm:$0xff]
        %v784 = vld [vmem:[%s638 + $0x230] sm:$0xff]
        %v785 = vld [vmem:[%s638 + $0x238] sm:$0xff]
        %v786 = vld [vmem:[%s638 + $0x240] sm:$0xff]
        %v787 = vld [vmem:[%s638 + $0x248] sm:$0xff]
        %v788 = vld [vmem:[%s638 + $0x250] sm:$0xff]
        %v789 = vld [vmem:[%s638 + $0x258] sm:$0xff]
        %v790 = vld [vmem:[%s638 + $0x260] sm:$0xff]
        %v791 = vld [vmem:[%s638 + $0x268] sm:$0xff]
        %v792 = vld [vmem:[%s638 + $0x270] sm:$0xff]
        %v793 = vld [vmem:[%s638 + $0x278] sm:$0xff]
        %v794 = vld [vmem:[%s638 + $0x280] sm:$0xff]
        %v795 = vld [vmem:[%s638 + $0x288] sm:$0xff]
        %v796 = vld [vmem:[%s638 + $0x290] sm:$0xff]
        %v797 = vld [vmem:[%s638 + $0x298] sm:$0xff]
        %v798 = vld [vmem:[%s638 + $0x2a0] sm:$0xff]
        %v799 = vld [vmem:[%s638 + $0x2a8] sm:$0xff]
        %v800 = vld [vmem:[%s638 + $0x2b0] sm:$0xff]
        %v801 = vld [vmem:[%s638 + $0x2b8] sm:$0xff]
        %v802 = vld [vmem:[%s638 + $0x2c0] sm:$0xff]
        %v803 = vld [vmem:[%s638 + $0x2c8] sm:$0xff]
        %v804 = vld [vmem:[%s638 + $0x2d0] sm:$0xff]
        %v805 = vld [vmem:[%s638 + $0x2d8] sm:$0xff]
        %v806 = vld [vmem:[%s638 + $0x2e0] sm:$0xff]
        %v807 = vld [vmem:[%s638 + $0x2e8] sm:$0xff]
        %v808 = vld [vmem:[%s638 + $0x2f0] sm:$0xff]
        %v809 = vld [vmem:[%s638 + $0x2f8] sm:$0xff]
        %v810 = vld [vmem:[%s688] sm:$0x3]
        %v812 = vlaneseq
        %v813 = vshrl.u32 %v812, 7
        %v814 = vsub.s32 0, %v813
        %v815 = vrot.slane %v810, %v814
        %v816 = vlaneseq
        %v817 = vshrl.u32 %v816, 7
        %v818 = vsub.s32 1, %v817
        %v819 = vrot.slane %v810, %v818
        %v918 = vunpack.c.l.b16 %v714
        %v919 = vunpack.c.h.b16 %v714
        %v920 = vunpack.c.l.b16 %v715
        %v921 = vunpack.c.h.b16 %v715
        %v922 = vunpack.c.l.b16 %v716
        %v923 = vunpack.c.h.b16 %v716
        %v924 = vunpack.c.l.b16 %v717
        %v925 = vunpack.c.h.b16 %v717
        %v926 = vunpack.c.l.b16 %v718
        %v927 = vunpack.c.h.b16 %v718
        %v928 = vunpack.c.l.b16 %v719
        %v929 = vunpack.c.h.b16 %v719
        %v930 = vunpack.c.l.b16 %v720
        %v931 = vunpack.c.h.b16 %v720
        %v932 = vunpack.c.l.b16 %v721
        %v933 = vunpack.c.h.b16 %v721
        %v934 = vunpack.c.l.b16 %v722
        %v935 = vunpack.c.h.b16 %v722
        %v936 = vunpack.c.l.b16 %v723
        %v937 = vunpack.c.h.b16 %v723
        %v938 = vunpack.c.l.b16 %v724
        %v939 = vunpack.c.h.b16 %v724
        %v940 = vunpack.c.l.b16 %v725
        %v941 = vunpack.c.h.b16 %v725
        %v942 = vunpack.c.l.b16 %v726
        %v943 = vunpack.c.h.b16 %v726
        %v944 = vunpack.c.l.b16 %v727
        %v945 = vunpack.c.h.b16 %v727
        %v946 = vunpack.c.l.b16 %v728
        %v947 = vunpack.c.h.b16 %v728
        %v948 = vunpack.c.l.b16 %v729
        %v949 = vunpack.c.h.b16 %v729
        %v950 = vunpack.c.l.b16 %v730
        %v951 = vunpack.c.h.b16 %v730
        %v952 = vunpack.c.l.b16 %v731
        %v953 = vunpack.c.h.b16 %v731
        %v954 = vunpack.c.l.b16 %v732
        %v955 = vunpack.c.h.b16 %v732
        %v956 = vunpack.c.l.b16 %v733
        %v957 = vunpack.c.h.b16 %v733
        %v958 = vunpack.c.l.b16 %v734
        %v959 = vunpack.c.h.b16 %v734
        %v960 = vunpack.c.l.b16 %v735
        %v961 = vunpack.c.h.b16 %v735
        %v962 = vunpack.c.l.b16 %v736
        %v963 = vunpack.c.h.b16 %v736
        %v964 = vunpack.c.l.b16 %v737
        %v965 = vunpack.c.h.b16 %v737
        %v966 = vunpack.c.l.b16 %v738
        %v967 = vunpack.c.h.b16 %v738
        %v968 = vunpack.c.l.b16 %v739
        %v969 = vunpack.c.h.b16 %v739
        %v970 = vunpack.c.l.b16 %v740
        %v971 = vunpack.c.h.b16 %v740
        %v972 = vunpack.c.l.b16 %v741
        %v973 = vunpack.c.h.b16 %v741
        %v974 = vunpack.c.l.b16 %v742
        %v975 = vunpack.c.h.b16 %v742
        %v976 = vunpack.c.l.b16 %v743
        %v977 = vunpack.c.h.b16 %v743
        %v978 = vunpack.c.l.b16 %v744
        %v979 = vunpack.c.h.b16 %v744
        %v980 = vunpack.c.l.b16 %v745
        %v981 = vunpack.c.h.b16 %v745
        %v982 = vunpack.c.l.b16 %v746
        %v983 = vunpack.c.h.b16 %v746
        %v984 = vunpack.c.l.b16 %v747
        %v985 = vunpack.c.h.b16 %v747
        %v986 = vunpack.c.l.b16 %v748
        %v987 = vunpack.c.h.b16 %v748
        %v988 = vunpack.c.l.b16 %v749
        %v989 = vunpack.c.h.b16 %v749
        %v990 = vunpack.c.l.b16 %v750
        %v991 = vunpack.c.h.b16 %v750
        %v992 = vunpack.c.l.b16 %v751
        %v993 = vunpack.c.h.b16 %v751
        %v994 = vunpack.c.l.b16 %v752
        %v995 = vunpack.c.h.b16 %v752
        %v996 = vunpack.c.l.b16 %v753
        %v997 = vunpack.c.h.b16 %v753
        %v998 = vunpack.c.l.b16 %v754
        %v999 = vunpack.c.h.b16 %v754
        %v1000 = vunpack.c.l.b16 %v755
        %v1001 = vunpack.c.h.b16 %v755
        %v1002 = vunpack.c.l.b16 %v756
        %v1003 = vunpack.c.h.b16 %v756
        %v1004 = vunpack.c.l.b16 %v757
        %v1005 = vunpack.c.h.b16 %v757
        %v1006 = vunpack.c.l.b16 %v758
        %v1007 = vunpack.c.h.b16 %v758
        %v1008 = vunpack.c.l.b16 %v759
        %v1009 = vunpack.c.h.b16 %v759
        %v1010 = vunpack.c.l.b16 %v760
        %v1011 = vunpack.c.h.b16 %v760
        %v1012 = vunpack.c.l.b16 %v761
        %v1013 = vunpack.c.h.b16 %v761
        %v1014 = vunpack.c.l.b16 %v762
        %v1015 = vunpack.c.h.b16 %v762
        %v1016 = vunpack.c.l.b16 %v763
        %v1017 = vunpack.c.h.b16 %v763
        %v1018 = vunpack.c.l.b16 %v764
        %v1019 = vunpack.c.h.b16 %v764
        %v1020 = vunpack.c.l.b16 %v765
        %v1021 = vunpack.c.h.b16 %v765
        %v1022 = vunpack.c.l.b16 %v766
        %v1023 = vunpack.c.h.b16 %v766
        %v1024 = vunpack.c.l.b16 %v767
        %v1025 = vunpack.c.h.b16 %v767
        %v1026 = vunpack.c.l.b16 %v768
        %v1027 = vunpack.c.h.b16 %v768
        %v1028 = vunpack.c.l.b16 %v769
        %v1029 = vunpack.c.h.b16 %v769
        %v1030 = vunpack.c.l.b16 %v770
        %v1031 = vunpack.c.h.b16 %v770
        %v1032 = vunpack.c.l.b16 %v771
        %v1033 = vunpack.c.h.b16 %v771
        %v1034 = vunpack.c.l.b16 %v772
        %v1035 = vunpack.c.h.b16 %v772
        %v1036 = vunpack.c.l.b16 %v773
        %v1037 = vunpack.c.h.b16 %v773
        %v1038 = vunpack.c.l.b16 %v774
        %v1039 = vunpack.c.h.b16 %v774
        %v1040 = vunpack.c.l.b16 %v775
        %v1041 = vunpack.c.h.b16 %v775
        %v1042 = vunpack.c.l.b16 %v776
        %v1043 = vunpack.c.h.b16 %v776
        %v1044 = vunpack.c.l.b16 %v777
        %v1045 = vunpack.c.h.b16 %v777
        %v1046 = vunpack.c.l.b16 %v778
        %v1047 = vunpack.c.h.b16 %v778
        %v1048 = vunpack.c.l.b16 %v779
        %v1049 = vunpack.c.h.b16 %v779
        %v1050 = vunpack.c.l.b16 %v780
        %v1051 = vunpack.c.h.b16 %v780
        %v1052 = vunpack.c.l.b16 %v781
        %v1053 = vunpack.c.h.b16 %v781
        %v1054 = vunpack.c.l.b16 %v782
        %v1055 = vunpack.c.h.b16 %v782
        %v1056 = vunpack.c.l.b16 %v783
        %v1057 = vunpack.c.h.b16 %v783
        %v1058 = vunpack.c.l.b16 %v784
        %v1059 = vunpack.c.h.b16 %v784
        %v1060 = vunpack.c.l.b16 %v785
        %v1061 = vunpack.c.h.b16 %v785
        %v1062 = vunpack.c.l.b16 %v786
        %v1063 = vunpack.c.h.b16 %v786
        %v1064 = vunpack.c.l.b16 %v787
        %v1065 = vunpack.c.h.b16 %v787
        %v1066 = vunpack.c.l.b16 %v788
        %v1067 = vunpack.c.h.b16 %v788
        %v1068 = vunpack.c.l.b16 %v789
        %v1069 = vunpack.c.h.b16 %v789
        %v1070 = vunpack.c.l.b16 %v790
        %v1071 = vunpack.c.h.b16 %v790
        %v1072 = vunpack.c.l.b16 %v791
        %v1073 = vunpack.c.h.b16 %v791
        %v1074 = vunpack.c.l.b16 %v792
        %v1075 = vunpack.c.h.b16 %v792
        %v1076 = vunpack.c.l.b16 %v793
        %v1077 = vunpack.c.h.b16 %v793
        %v1078 = vunpack.c.l.b16 %v794
        %v1079 = vunpack.c.h.b16 %v794
        %v1080 = vunpack.c.l.b16 %v795
        %v1081 = vunpack.c.h.b16 %v795
        %v1082 = vunpack.c.l.b16 %v796
        %v1083 = vunpack.c.h.b16 %v796
        %v1084 = vunpack.c.l.b16 %v797
        %v1085 = vunpack.c.h.b16 %v797
        %v1086 = vunpack.c.l.b16 %v798
        %v1087 = vunpack.c.h.b16 %v798
        %v1088 = vunpack.c.l.b16 %v799
        %v1089 = vunpack.c.h.b16 %v799
        %v1090 = vunpack.c.l.b16 %v800
        %v1091 = vunpack.c.h.b16 %v800
        %v1092 = vunpack.c.l.b16 %v801
        %v1093 = vunpack.c.h.b16 %v801
        %v1094 = vunpack.c.l.b16 %v802
        %v1095 = vunpack.c.h.b16 %v802
        %v1096 = vunpack.c.l.b16 %v803
        %v1097 = vunpack.c.h.b16 %v803
        %v1098 = vunpack.c.l.b16 %v804
        %v1099 = vunpack.c.h.b16 %v804
        %v1100 = vunpack.c.l.b16 %v805
        %v1101 = vunpack.c.h.b16 %v805
        %v1102 = vunpack.c.l.b16 %v806
        %v1103 = vunpack.c.h.b16 %v806
        %v1104 = vunpack.c.l.b16 %v807
        %v1105 = vunpack.c.h.b16 %v807
        %v1106 = vunpack.c.l.b16 %v808
        %v1107 = vunpack.c.h.b16 %v808
        %v1108 = vunpack.c.l.b16 %v809
        %v1109 = vunpack.c.h.b16 %v809
        %v1110 = vpack.c.b16 %v920, %v918
        %v1111 = vpack.c.b16 %v921, %v919
        %v1112 = vpack.c.b16 %v924, %v922
        %v1113 = vpack.c.b16 %v925, %v923
        %v1114 = vpack.c.b16 %v928, %v926
        %v1115 = vpack.c.b16 %v929, %v927
        %v1116 = vpack.c.b16 %v932, %v930
        %v1117 = vpack.c.b16 %v933, %v931
        %v1118 = vpack.c.b16 %v936, %v934
        %v1119 = vpack.c.b16 %v937, %v935
        %v1120 = vpack.c.b16 %v940, %v938
        %v1121 = vpack.c.b16 %v941, %v939
        %v1122 = vpack.c.b16 %v944, %v942
        %v1123 = vpack.c.b16 %v945, %v943
        %v1124 = vpack.c.b16 %v948, %v946
        %v1125 = vpack.c.b16 %v949, %v947
        %v1126 = vpack.c.b16 %v952, %v950
        %v1127 = vpack.c.b16 %v953, %v951
        %v1128 = vpack.c.b16 %v956, %v954
        %v1129 = vpack.c.b16 %v957, %v955
        %v1130 = vpack.c.b16 %v960, %v958
        %v1131 = vpack.c.b16 %v961, %v959
        %v1132 = vpack.c.b16 %v964, %v962
        %v1133 = vpack.c.b16 %v965, %v963
        %v1134 = vpack.c.b16 %v968, %v966
        %v1135 = vpack.c.b16 %v969, %v967
        %v1136 = vpack.c.b16 %v972, %v970
        %v1137 = vpack.c.b16 %v973, %v971
        %v1138 = vpack.c.b16 %v976, %v974
        %v1139 = vpack.c.b16 %v977, %v975
        %v1140 = vpack.c.b16 %v980, %v978
        %v1141 = vpack.c.b16 %v981, %v979
        %v1142 = vpack.c.b16 %v984, %v982
        %v1143 = vpack.c.b16 %v985, %v983
        %v1144 = vpack.c.b16 %v988, %v986
        %v1145 = vpack.c.b16 %v989, %v987
        %v1146 = vpack.c.b16 %v992, %v990
        %v1147 = vpack.c.b16 %v993, %v991
        %v1148 = vpack.c.b16 %v996, %v994
        %v1149 = vpack.c.b16 %v997, %v995
        %v1150 = vpack.c.b16 %v1000, %v998
        %v1151 = vpack.c.b16 %v1001, %v999
        %v1152 = vpack.c.b16 %v1004, %v1002
        %v1153 = vpack.c.b16 %v1005, %v1003
        %v1154 = vpack.c.b16 %v1008, %v1006
        %v1155 = vpack.c.b16 %v1009, %v1007
        %v1156 = vpack.c.b16 %v1012, %v1010
        %v1157 = vpack.c.b16 %v1013, %v1011
        %v1158 = vpack.c.b16 %v1016, %v1014
        %v1159 = vpack.c.b16 %v1017, %v1015
        %v1160 = vpack.c.b16 %v1020, %v1018
        %v1161 = vpack.c.b16 %v1021, %v1019
        %v1162 = vpack.c.b16 %v1024, %v1022
        %v1163 = vpack.c.b16 %v1025, %v1023
        %v1164 = vpack.c.b16 %v1028, %v1026
        %v1165 = vpack.c.b16 %v1029, %v1027
        %v1166 = vpack.c.b16 %v1032, %v1030
        %v1167 = vpack.c.b16 %v1033, %v1031
        %v1168 = vpack.c.b16 %v1036, %v1034
        %v1169 = vpack.c.b16 %v1037, %v1035
        %v1170 = vpack.c.b16 %v1040, %v1038
        %v1171 = vpack.c.b16 %v1041, %v1039
        %v1172 = vpack.c.b16 %v1044, %v1042
        %v1173 = vpack.c.b16 %v1045, %v1043
        %v1174 = vpack.c.b16 %v1048, %v1046
        %v1175 = vpack.c.b16 %v1049, %v1047
        %v1176 = vpack.c.b16 %v1052, %v1050
        %v1177 = vpack.c.b16 %v1053, %v1051
        %v1178 = vpack.c.b16 %v1056, %v1054
        %v1179 = vpack.c.b16 %v1057, %v1055
        %v1180 = vpack.c.b16 %v1060, %v1058
        %v1181 = vpack.c.b16 %v1061, %v1059
        %v1182 = vpack.c.b16 %v1064, %v1062
        %v1183 = vpack.c.b16 %v1065, %v1063
        %v1184 = vpack.c.b16 %v1068, %v1066
        %v1185 = vpack.c.b16 %v1069, %v1067
        %v1186 = vpack.c.b16 %v1072, %v1070
        %v1187 = vpack.c.b16 %v1073, %v1071
        %v1188 = vpack.c.b16 %v1076, %v1074
        %v1189 = vpack.c.b16 %v1077, %v1075
        %v1190 = vpack.c.b16 %v1080, %v1078
        %v1191 = vpack.c.b16 %v1081, %v1079
        %v1192 = vpack.c.b16 %v1084, %v1082
        %v1193 = vpack.c.b16 %v1085, %v1083
        %v1194 = vpack.c.b16 %v1088, %v1086
        %v1195 = vpack.c.b16 %v1089, %v1087
        %v1196 = vpack.c.b16 %v1092, %v1090
        %v1197 = vpack.c.b16 %v1093, %v1091
        %v1198 = vpack.c.b16 %v1096, %v1094
        %v1199 = vpack.c.b16 %v1097, %v1095
        %v1200 = vpack.c.b16 %v1100, %v1098
        %v1201 = vpack.c.b16 %v1101, %v1099
        %v1202 = vpack.c.b16 %v1104, %v1102
        %v1203 = vpack.c.b16 %v1105, %v1103
        %v1204 = vpack.c.b16 %v1108, %v1106
        %v1205 = vpack.c.b16 %v1109, %v1107
        %1302 = vmatprep.subr.bf16.mxu0 %v1111
        %1303 = vmatpush1.bf16.msra.mxu0 %v1110
        %1304 = vmatprep.subr.bf16.mxu0 %v1113
        %1305 = vmatpush1.bf16.msra.mxu0 %v1112
        %1306 = vmatprep.subr.bf16.mxu0 %v1115
        %1307 = vmatpush1.bf16.msra.mxu0 %v1114
        %1308 = vmatprep.subr.bf16.mxu0 %v1117
        %1309 = vmatpush1.bf16.msra.mxu0 %v1116
        %1310 = vmatprep.subr.bf16.mxu0 %v1119
        %1311 = vmatpush1.bf16.msra.mxu0 %v1118
        %1312 = vmatprep.subr.bf16.mxu0 %v1121
        %1313 = vmatpush1.bf16.msra.mxu0 %v1120
        %1314 = vmatprep.subr.bf16.mxu0 %v1123
        %1315 = vmatpush1.bf16.msra.mxu0 %v1122
        %1316 = vmatprep.subr.bf16.mxu0 %v1125
        %1317 = vmatpush1.bf16.msra.mxu0 %v1124
        %1318 = vmatprep.subr.bf16.mxu0 %v1127
        %1319 = vmatpush1.bf16.msra.mxu0 %v1126
        %1320 = vmatprep.subr.bf16.mxu0 %v1129
        %1321 = vmatpush1.bf16.msra.mxu0 %v1128
        %1322 = vmatprep.subr.bf16.mxu0 %v1131
        %1323 = vmatpush1.bf16.msra.mxu0 %v1130
        %1324 = vmatprep.subr.bf16.mxu0 %v1133
        %1325 = vmatpush1.bf16.msra.mxu0 %v1132
        %1326 = vmatprep.subr.bf16.mxu0 %v1135
        %1327 = vmatpush1.bf16.msra.mxu0 %v1134
        %1328 = vmatprep.subr.bf16.mxu0 %v1137
        %1329 = vmatpush1.bf16.msra.mxu0 %v1136
        %1330 = vmatprep.subr.bf16.mxu0 %v1139
        %1331 = vmatpush1.bf16.msra.mxu0 %v1138
        %1332 = vmatprep.subr.bf16.mxu0 %v1141
        %1333 = vmatpush1.bf16.msra.mxu0 %v1140
        %1334 = vmatprep.mubr.bf16.mxu0 %v709
        %1335 = vmatmul.mubr.bf16.gmra.mrb[0].mxu0 %v708
        %v1336 = vpop.f32.mrb[0].mxu0
        %v1337 = vadd.f32 %v815, %v1336
        %v1338 = vpop.f32.mrb[0].mxu0
        %v1339 = vadd.f32 %v819, %v1338
        %v1340 = vpop.f32.mrb[0].mxu0
        %v1341 = vpop.f32.mrb[0].mxu0
        %1342 = vdwg.mxu0
        %1343 = vmatprep.subr.bf16.mxu0 %v1143
        %1344 = vmatpush1.bf16.msra.mxu0 %v1142
        %1345 = vmatprep.subr.bf16.mxu0 %v1145
        %1346 = vmatpush1.bf16.msra.mxu0 %v1144
        %1347 = vmatprep.subr.bf16.mxu0 %v1147
        %1348 = vmatpush1.bf16.msra.mxu0 %v1146
        %1349 = vmatprep.subr.bf16.mxu0 %v1149
        %1350 = vmatpush1.bf16.msra.mxu0 %v1148
        %1351 = vmatprep.subr.bf16.mxu0 %v1151
        %1352 = vmatpush1.bf16.msra.mxu0 %v1150
        %1353 = vmatprep.subr.bf16.mxu0 %v1153
        %1354 = vmatpush1.bf16.msra.mxu0 %v1152
        %1355 = vmatprep.subr.bf16.mxu0 %v1155
        %1356 = vmatpush1.bf16.msra.mxu0 %v1154
        %1357 = vmatprep.subr.bf16.mxu0 %v1157
        %1358 = vmatpush1.bf16.msra.mxu0 %v1156
        %1359 = vmatprep.subr.bf16.mxu0 %v1159
        %1360 = vmatpush1.bf16.msra.mxu0 %v1158
        %1361 = vmatprep.subr.bf16.mxu0 %v1161
        %1362 = vmatpush1.bf16.msra.mxu0 %v1160
        %1363 = vmatprep.subr.bf16.mxu0 %v1163
        %1364 = vmatpush1.bf16.msra.mxu0 %v1162
        %1365 = vmatprep.subr.bf16.mxu0 %v1165
        %1366 = vmatpush1.bf16.msra.mxu0 %v1164
        %1367 = vmatprep.subr.bf16.mxu0 %v1167
        %1368 = vmatpush1.bf16.msra.mxu0 %v1166
        %1369 = vmatprep.subr.bf16.mxu0 %v1169
        %1370 = vmatpush1.bf16.msra.mxu0 %v1168
        %1371 = vmatprep.subr.bf16.mxu0 %v1171
        %1372 = vmatpush1.bf16.msra.mxu0 %v1170
        %1373 = vmatprep.subr.bf16.mxu0 %v1173
        %1374 = vmatpush1.bf16.msra.mxu0 %v1172
        %1375 = vmatprep.mubr.bf16.mxu0 %v711
        %1376 = vmatmul.mubr.bf16.gmra.mrb[0].mxu0 %v710
        %v1377 = vpop.f32.mrb[0].mxu0
        %v1378 = vadd.f32 %v1337, %v1377
        %v1379 = vpop.f32.mrb[0].mxu0
        %v1380 = vadd.f32 %v1339, %v1379
        %v1381 = vpop.f32.mrb[0].mxu0
        %v1382 = vpop.f32.mrb[0].mxu0
        %1383 = vdwg.mxu0
        %1384 = vmatprep.subr.bf16.mxu0 %v1175
        %1385 = vmatpush1.bf16.msra.mxu0 %v1174
        %1386 = vmatprep.subr.bf16.mxu0 %v1177
        %1387 = vmatpush1.bf16.msra.mxu0 %v1176
        %1388 = vmatprep.subr.bf16.mxu0 %v1179
        %1389 = vmatpush1.bf16.msra.mxu0 %v1178
        %1390 = vmatprep.subr.bf16.mxu0 %v1181
        %1391 = vmatpush1.bf16.msra.mxu0 %v1180
        %1392 = vmatprep.subr.bf16.mxu0 %v1183
        %1393 = vmatpush1.bf16.msra.mxu0 %v1182
        %1394 = vmatprep.subr.bf16.mxu0 %v1185
        %1395 = vmatpush1.bf16.msra.mxu0 %v1184
        %1396 = vmatprep.subr.bf16.mxu0 %v1187
        %1397 = vmatpush1.bf16.msra.mxu0 %v1186
        %1398 = vmatprep.subr.bf16.mxu0 %v1189
        %1399 = vmatpush1.bf16.msra.mxu0 %v1188
        %1400 = vmatprep.subr.bf16.mxu0 %v1191
        %1401 = vmatpush1.bf16.msra.mxu0 %v1190
        %1402 = vmatprep.subr.bf16.mxu0 %v1193
        %1403 = vmatpush1.bf16.msra.mxu0 %v1192
        %1404 = vmatprep.subr.bf16.mxu0 %v1195
        %1405 = vmatpush1.bf16.msra.mxu0 %v1194
        %1406 = vmatprep.subr.bf16.mxu0 %v1197
        %1407 = vmatpush1.bf16.msra.mxu0 %v1196
        %1408 = vmatprep.subr.bf16.mxu0 %v1199
        %1409 = vmatpush1.bf16.msra.mxu0 %v1198
        %1410 = vmatprep.subr.bf16.mxu0 %v1201
        %1411 = vmatpush1.bf16.msra.mxu0 %v1200
        %1412 = vmatprep.subr.bf16.mxu0 %v1203
        %1413 = vmatpush1.bf16.msra.mxu0 %v1202
        %1414 = vmatprep.subr.bf16.mxu0 %v1205
        %1415 = vmatpush1.bf16.msra.mxu0 %v1204
        %1416 = vmatprep.mubr.bf16.mxu0 %v713
        %1417 = vmatmul.mubr.bf16.gmra.mrb[0].mxu0 %v712
        %v1418 = vpop.f32.mrb[0].mxu0
        %v1419 = vadd.f32 %v1378, %v1418
        %v1420 = vpop.f32.mrb[0].mxu0
        %v1421 = vadd.f32 %v1380, %v1420
        %v1422 = vpop.f32.mrb[0].mxu0
        %v1423 = vpop.f32.mrb[0].mxu0
        %1424 = vdwg.mxu0
        %vm1425 = vcmp.gt.f32.partialorder %v1421, 20.0
        %v1426 = vmin.f32 %v1421, 20.0
        %v1427 = vmul.f32 %v1426, 1.442695
        %v1428 = vpow.pop %v1427
        %v1429 = vadd.f32 %v1428, 1.0
        %v1430 = vlog2.pop %v1429
        %v1431 = vmul.f32 %v1430, 0.6931472
        %v1432 = vmul.f32 -0.5, %v1428
        %v1433 = vadd.f32 %v1432, 1.0
        %v1434 = vmul.f32 %v1433, %v1428
        %v1435 = vand.u32 2147483647, %v1428
        %vm1436 = vcmp.lt.f32.partialorder %v1435, 0.0004427343
        %v1437 = vsel %vm1436, %v1434, %v1431
        %v1438 = vsel %vm1425, %v1421, %v1437
        %v1439 = vmax.f32 %v1438, 1e-30
        %v1440 = vld [vmem:[%s677] sm:$0xff]
        %v1441 = vsub.f32 %v1440, %v1419
        %v1442 = vmul.f32 %v1441, %v1441
        %v1443 = vrcp.pop %v1439
        %v1444 = vmul.f32 %v1442, %v1443
        %v1445 = vlog2.pop %v1439
        %v1446 = vmul.f32 %v1445, 0.6931472
        %v1447 = vadd.f32 %v1444, %v1446
        %1448 = vadd.xlane.f32.xlu0 %v1447
        %v1449 = vpop.xlane.xlu0 %1448
        %v1450 = vrot.slane %v1449, 4
        %v1451 = vadd.f32 %v1449, %v1450
        %v1452 = vrot.slane %v1451, 2
        %v1453 = vadd.f32 %v1451, %v1452
        %v1454 = vrot.slane %v1453, 1
        %v1455 = vadd.f32 %v1453, %v1454
        %v1456 = vld [vmem:[#allocation2] sm:$0x1]
        %v1457 = vadd.f32 %v1456, %v1455
        %vm1458 = vcmask 0
        %1459 = vst.msk [vmem:[#allocation2] sm:$0x1] %vm1458, %v1457
        %p1460 = scmp.eq.s32.totalorder %s20, 2
        // Predicated region
        $region79: #{gaussian_approx_loss.1} parent=69 // pred_check
          %p1461 = pneg %p1460
        $region80: #{gaussian_approx_loss.1} parent=69 // pred_check_branch
          %1463 = sbr.rel (%p1461) target = $region82
        $region81: #{gaussian_approx_loss.1} parent=69 // pred_region
          %v1464 = vld [vmem:[#allocation2] sm:$0x1]
          %v1466 = vlaneseq
          %v1467 = vshrl.u32 %v1466, 7
          %v1468 = vsub.s32 0, %v1467
          %v1469 = vrot.slane %v1464, %v1468
          %1470 = vset.pattern.permute.xlu0 0
          %1471 = vperm.xlu0 %1470, %v1469
          %v1472 = vpop.permute.xlu0 %1471
          %1474 = vst [vmem:[%s695] sm:$0xff] %v1472
        $region82: #{gaussian_approx_loss.1} parent=69 // pred_fallthru
          _
        %p1475 = scmp.lt.s32.totalorder %s19, 1
        %s1476 = scalar_select %p1475, %s19, 1
        %s1477 = smul.addr %s1476, 8
        %s1478 = scalar_lea.vmem %s4, %s1477
        // Predicated region
        $region83: #{gaussian_approx_loss.1} parent=69 // pred_check
          %p1479 = pneg %p156
        $region84: #{gaussian_approx_loss.1} parent=69 // pred_check_branch
          %1481 = sbr.rel (%p1479) target = $region86
        $region85: #{gaussian_approx_loss.1} parent=69 // pred_region
          _
        $region86: #{gaussian_approx_loss.1} parent=69 // pred_fallthru
          _
      $region70: #{gaussian_approx_loss.1} parent=5 // pred_fallthru
        _
      %p1482 = scmp.le.s32.totalorder 2, %s10
      // Predicated region
      $region87: #{gaussian_approx_loss.1} parent=5 // pred_check
        %p1483 = pneg %p1482
      $region88: #{gaussian_approx_loss.1} parent=5 // pred_check_branch
        %1485 = sbr.rel (%p1483) target = $region90
      $region89: #{gaussian_approx_loss.1} parent=5 // pred_region
        %s1486 = ssub.s32 %s10, 2
        // Predicated region
        $region91: #{gaussian_approx_loss.1} parent=89 // pred_check
          %p1487 = pneg %p162
        $region92: #{gaussian_approx_loss.1} parent=89 // pred_check_branch
          %1489 = sbr.rel (%p1487) target = $region94
        $region93: #{gaussian_approx_loss.1} parent=89 // pred_region
          %p1490 = scmp.lt.s32.totalorder %s21, 1
          %s1491 = scalar_select %p1490, %s21, 1
          %s1492 = smul.addr %s1491, 8
          %s1493 = scalar_lea.vmem %s4, %s1492
        $region94: #{gaussian_approx_loss.1} parent=89 // pred_fallthru
          _
      $region90: #{gaussian_approx_loss.1} parent=5 // pred_fallthru
        _
    $region6: #{gaussian_approx_loss.1} parent=1 // loop_footer
      %s14 = sadd.s32 1, %s10
    $region7: #{gaussian_approx_loss.1} parent=1 // loop_footer_branch
      %9 = sbr.rel target = $region3
    $region8: #{gaussian_approx_loss.1} parent=1 // loop_exit
      _

</llo_original>
